<compile_context>
chip_gen: v7x
topology: tpu7x:2x2x1
jax: 0.10.0
libtpu: 0.0.40
codegen_flags: <defaults>
</compile_context>

<pallas_src>
import numpy as np
import jax
import jax.numpy as jnp
from jax import lax
from jax.experimental import pallas as pl
from jax.experimental.pallas import tpu as pltpu

H = 32          # hidden_size
V = 64          # output_size (vocab)
L = 8           # max_length (attention span)
LANES = 128
NEG = -1.0e30   # padding-lane mask value for the batched log_softmax

# ---- packed bf16 weight slab: six (H, 128) blocks, every block zero-padded to 128 lanes
R_EMB_ATTN = 0 * H      # lanes 0:L   = attn.weight.T rows multiplying `embedded`
R_EMB_COMB = 1 * H      # lanes 0:H   = attn_combine.weight.T rows multiplying `embedded`
R_HBLOCK   = 2 * H      # lanes 0:3H  = GRU weight_hh.T (r|z|n), lanes 3H:3H+L = attn.weight.T rows for `hidden`
R_XBLOCK   = 3 * H      # lanes 0:3H  = GRU weight_ih.T (r|z|n)
R_COMB_WA  = 4 * H      # lanes 0:H   = attn_combine.weight.T rows multiplying `attn_applied`
R_OUT_W    = 5 * H      # lanes 0:V   = out.weight.T
WSLAB_ROWS = 6 * H

# ---- f32 bias slab: one 128-lane row per bias
B_EA, B_CE, B_H, B_X, B_OUT = 0, 1, 2, 3, 4
BIAS_ROWS = 8


def attn_decoder_fused_kernel(emb_ref, hid0_ref, enc_ref, wslab_ref, bias_ref,
                              logp_ref, hid_out_ref, attn_out_ref,
                              ae_ref, ce_ref, h_all_ref):
    """N teacher-forced AttnDecoderRNN steps fused into one kernel invocation.

    emb_ref  : (N,H)  f32  VMEM  pre-gathered embeddings per step
    hid0_ref : (1,H)  f32  VMEM  initial hidden[0]
    enc_ref  : (L,H)  f32  VMEM  encoder_outputs (resident)
    wslab_ref: (6H,128) bf16 VMEM packed weights (resident)
    bias_ref : (8,128) f32 VMEM  packed biases (+ -1e30 lane mask for logp)
    outputs  : logp slab (N,128), final hidden (1,H), attn_weights (N,L)
    scratch  : ae (N,128), ce (N,128), h_all (N,H)
    """
    n_steps = emb_ref.shape[0]

    # ---- hoisted, loop-invariant loads (full 128-lane, unmasked) ----
    w_h = wslab_ref[R_HBLOCK:R_HBLOCK + H, :]          # (H,128) bf16
    w_x = wslab_ref[R_XBLOCK:R_XBLOCK + H, :]          # (H,128) bf16
    b_h = bias_ref[B_H:B_H + 1, :]                     # (1,128) f32
    b_x = bias_ref[B_X:B_X + 1, :]                     # (1,128) f32

    # ---- pre-loop batched work (off the recurrence critical path) ----
    emb_bf = emb_ref[...].astype(jnp.bfloat16)                               # (N,H)
    ae_ref[...] = (jnp.dot(emb_bf, wslab_ref[R_EMB_ATTN:R_EMB_ATTN + H, :],
                           preferred_element_type=jnp.float32)
                   + bias_ref[B_EA:B_EA + 1, :])                             # (N,128)
    ce_ref[...] = (jnp.dot(emb_bf, wslab_ref[R_EMB_COMB:R_EMB_COMB + H, :],
                           preferred_element_type=jnp.float32)
                   + bias_ref[B_CE:B_CE + 1, :])                             # (N,128)
    # attn_combine fold: (attn_w @ enc) @ W_ca == attn_w @ (enc @ W_ca)
    enc_comb_bf = jnp.dot(enc_ref[...].astype(jnp.bfloat16),
                          wslab_ref[R_COMB_WA:R_COMB_WA + H, :],
                          preferred_element_type=jnp.float32
                          ).astype(jnp.bfloat16)                            # (L,128)

    def step(i, h_prev):                                                    # h_prev (1,H) f32
        # --- 1 MXU push: all three h-gates + attention h-contribution ---
        h_bf = h_prev.astype(jnp.bfloat16)
        hdot = jnp.dot(h_bf, w_h, preferred_element_type=jnp.float32) + b_h  # (1,128)

        # attn_weights = softmax(attn(cat(embedded, hidden)))
        ae_row = ae_ref[pl.ds(i, 1), :]                                      # (1,128) dense load
        logits_a = ae_row[:, 0:L] + hdot[:, 3 * H:3 * H + L]                 # (1,L)
        m_a = jnp.max(logits_a, axis=1, keepdims=True)
        e_a = jnp.exp(logits_a - m_a)
        attn_w = e_a / jnp.sum(e_a, axis=1, keepdims=True)                   # exact divide
        attn_out_ref[pl.ds(i, 1), :] = attn_w

        # output = relu(attn_combine(cat(embedded, attn_applied)))  (combine folded)
        cv = jnp.dot(attn_w.astype(jnp.bfloat16), enc_comb_bf,
                     preferred_element_type=jnp.float32)                     # (1,128)
        ce_row = ce_ref[pl.ds(i, 1), :]
        x = jnp.maximum(ce_row + cv, 0.0)[:, 0:H]                            # (1,H)

        # single-layer GRU step (gate order r, z, n), one wide x-dot
        xdot = jnp.dot(x.astype(jnp.bfloat16), w_x,
                       preferred_element_type=jnp.float32) + b_x             # (1,128)
        r = jax.nn.sigmoid(xdot[:, 0:H] + hdot[:, 0:H])
        z = jax.nn.sigmoid(xdot[:, H:2 * H] + hdot[:, H:2 * H])
        ncand = jnp.tanh(xdot[:, 2 * H:3 * H] + r * hdot[:, 2 * H:3 * H])
        h_new = (1.0 - z) * ncand + z * h_prev                               # (1,H)

        h_all_ref[pl.ds(i, 1), :] = h_new                                    # deferred out-proj
        return h_new

    unroll = True if n_steps <= 16 else 8
    h_final = lax.fori_loop(0, n_steps, step, hid0_ref[...], unroll=unroll)
    hid_out_ref[...] = h_final

    # ---- post-loop: batched out-projection + log_softmax, lane-dense store ----
    hn_bf = h_all_ref[...].astype(jnp.bfloat16)                              # (N,H)
    logits = (jnp.dot(hn_bf, wslab_ref[R_OUT_W:R_OUT_W + H, :],
                      preferred_element_type=jnp.float32)
              + bias_ref[B_OUT:B_OUT + 1, :])                                # (N,128), pads = -1e30
    m_o = jnp.max(logits, axis=1, keepdims=True)
    sh = logits - m_o
    lse = jnp.log(jnp.sum(jnp.exp(sh), axis=1, keepdims=True))
    logp_ref[...] = sh - lse                                                 # single dense write


# ----------------------------------------------------------------------------- glue

def init_params(key):
    ks = jax.random.split(key, 8)
    s = 0.1
    return dict(
        embedding=jax.random.normal(ks[0], (V, H), jnp.float32) * s,    # nn.Embedding(V, H)
        attn_wT=jax.random.normal(ks[1], (2 * H, L), jnp.float32) * s,  # nn.Linear(2H, L).weight.T
        attn_b=jax.random.normal(ks[2], (1, L), jnp.float32) * s,
        comb_wT=jax.random.normal(ks[3], (2 * H, H), jnp.float32) * s,  # nn.Linear(2H, H).weight.T
        comb_b=jnp.zeros((1, H), jnp.float32),
        w_ihT=jax.random.normal(ks[4], (H, 3 * H), jnp.float32) * s,    # GRU weight_ih_l0.T (r|z|n)
        w_hhT=jax.random.normal(ks[5], (H, 3 * H), jnp.float32) * s,    # GRU weight_hh_l0.T (r|z|n)
        b_ih=jnp.zeros((1, 3 * H), jnp.float32),
        b_hh=jnp.zeros((1, 3 * H), jnp.float32),
        out_wT=jax.random.normal(ks[6], (H, V), jnp.float32) * s,       # nn.Linear(H, V).weight.T
        out_b=jax.random.normal(ks[7], (1, V), jnp.float32) * s,
    )


def pack_params(params):
    """Build the bf16 weight slab + f32 bias slab once (outside the hot path)."""
    w = np.zeros((WSLAB_ROWS, LANES), np.float32)

    def put(r, c, mat):
        mat = np.asarray(mat, np.float32)
        w[r:r + mat.shape[0], c:c + mat.shape[1]] = mat

    put(R_EMB_ATTN, 0, params["attn_wT"][:H])          # (H, L)
    put(R_EMB_COMB, 0, params["comb_wT"][:H])          # (H, H)
    put(R_HBLOCK, 0, params["w_hhT"])                  # (H, 3H)  lanes 0:96
    put(R_HBLOCK, 3 * H, params["attn_wT"][H:])        # (H, L)   lanes 96:104
    put(R_XBLOCK, 0, params["w_ihT"])                  # (H, 3H)
    put(R_COMB_WA, 0, params["comb_wT"][H:])           # (H, H)
    put(R_OUT_W, 0, params["out_wT"])                  # (H, V)

    b = np.zeros((BIAS_ROWS, LANES), np.float32)
    b[B_EA, :L] = np.asarray(params["attn_b"], np.float32).reshape(-1)
    b[B_CE, :H] = np.asarray(params["comb_b"], np.float32).reshape(-1)
    b[B_H, :3 * H] = np.asarray(params["b_hh"], np.float32).reshape(-1)
    b[B_X, :3 * H] = np.asarray(params["b_ih"], np.float32).reshape(-1)
    b[B_OUT, :V] = np.asarray(params["out_b"], np.float32).reshape(-1)
    b[B_OUT, V:] = NEG                                 # mask padding lanes for log_softmax
    return dict(wslab=jnp.asarray(w, jnp.bfloat16),
                bias=jnp.asarray(b, jnp.float32),
                embedding=params["embedding"])


def attn_decoder_decode(packed, tokens, hidden, encoder_outputs):
    """Run tokens.shape[0] teacher-forced decoder steps in ONE pallas_call."""
    tokens = jnp.asarray(tokens, jnp.int32)
    n = int(tokens.shape[0])
    # embedded = dropout(embedding(input)) — gather hoisted out of the kernel;
    # dropout is eval-mode identity.
    # TODO(synk): training-mode nn.Dropout (random mask + 1/(1-p) scale) not implemented.
    emb = jnp.take(packed["embedding"], tokens, axis=0)            # (N, H)

    vmem = pl.BlockSpec(memory_space=pltpu.MemorySpace.VMEM)
    kernel = pl.pallas_call(
        attn_decoder_fused_kernel,
        out_shape=(jax.ShapeDtypeStruct((n, LANES), jnp.float32),  # lane-dense logp slab
                   jax.ShapeDtypeStruct((1, H), jnp.float32),      # final hidden
                   jax.ShapeDtypeStruct((n, L), jnp.float32)),     # attn_weights per step
        in_specs=[vmem, vmem, vmem, vmem, vmem],
        out_specs=(vmem, vmem, vmem),
        scratch_shapes=[pltpu.VMEM((n, LANES), jnp.float32),       # emb-side attn pre-logits
                        pltpu.VMEM((n, LANES), jnp.float32),       # emb-side combine pre-act
                        pltpu.VMEM((n, H), jnp.float32)],          # h_new per step
    )
    logp_pad, h_new, attn_w = kernel(emb, hidden[0], encoder_outputs,
                                     packed["wslab"], packed["bias"])
    return logp_pad[:, :V], h_new.reshape(1, 1, H), attn_w


def attn_decoder_forward(packed, token, hidden, encoder_outputs):
    """Exact single-step equivalent of AttnDecoderRNN.forward (eval mode)."""
    tokens = jnp.asarray([token], dtype=jnp.int32)
    return attn_decoder_decode(packed, tokens, hidden, encoder_outputs)


# ----------------------------------------------------------------------------- reference (pure JAX)

def reference_step(params, token, hid, enc):
    emb = params["embedding"][token][None, :]
    cat1 = jnp.concatenate([emb, hid], axis=1)
    attn_w = jax.nn.softmax(cat1 @ params["attn_wT"] + params["attn_b"], axis=1)
    applied = attn_w @ enc
    cat2 = jnp.concatenate([emb, applied], axis=1)
    x = jax.nn.relu(cat2 @ params["comb_wT"] + params["comb_b"])
    gi = x @ params["w_ihT"] + params["b_ih"]
    gh = hid @ params["w_hhT"] + params["b_hh"]
    r = jax.nn.sigmoid(gi[:, :H] + gh[:, :H])
    z = jax.nn.sigmoid(gi[:, H:2 * H] + gh[:, H:2 * H])
    n = jnp.tanh(gi[:, 2 * H:] + r * gh[:, 2 * H:])
    h_new = (1.0 - z) * n + z * hid
    logp = jax.nn.log_softmax(h_new @ params["out_wT"] + params["out_b"], axis=1)
    return logp, h_new, attn_w


if __name__ == "__main__":
    key = jax.random.PRNGKey(0)
    k_params, k_hid, k_enc, k_tok = jax.random.split(key, 4)

    params = init_params(k_params)
    packed = pack_params(params)

    n_steps = 8
    tokens = jax.random.randint(k_tok, (n_steps,), 0, V, dtype=jnp.int32)
    hidden = jax.random.normal(k_hid, (1, 1, H), jnp.float32)          # initHidden-style state
    encoder_outputs = jax.random.normal(k_enc, (L, H), jnp.float32)

    # Fused multi-step (teacher-forced) decode: one kernel launch for all steps.
    logp_all, hid_final, attn_all = attn_decoder_decode(
        packed, tokens, hidden, encoder_outputs)
    jax.block_until_ready((logp_all, hid_final, attn_all))
    assert logp_all.shape == (n_steps, V)
    assert hid_final.shape == (1, 1, H)
    assert attn_all.shape == (n_steps, L)

    # Single-step API identical to the PyTorch module's forward.
    logp1, hid1, attn1 = attn_decoder_forward(packed, int(tokens[0]), hidden, encoder_outputs)
    jax.block_until_ready((logp1, hid1, attn1))
    assert logp1.shape == (1, V) and hid1.shape == (1, 1, H) and attn1.shape == (1, L)

    # Pure-JAX f32 reference for numerical sanity (kernel uses bf16 MXU operands).
    h = hidden[0]
    ref_logp, ref_attn = [], []
    for t in np.asarray(tokens):
        lp, h, aw = reference_step(params, int(t), h, encoder_outputs)
        ref_logp.append(lp)
        ref_attn.append(aw)
    ref_logp = jnp.concatenate(ref_logp, axis=0)
    ref_attn = jnp.concatenate(ref_attn, axis=0)

    np.testing.assert_allclose(np.asarray(logp_all), np.asarray(ref_logp), atol=2e-2, rtol=2e-2)
    np.testing.assert_allclose(np.asarray(attn_all), np.asarray(ref_attn), atol=2e-2, rtol=2e-2)
    np.testing.assert_allclose(np.asarray(hid_final[0]), np.asarray(h), atol=2e-2, rtol=2e-2)

    np.testing.assert_allclose(np.asarray(logp1), np.asarray(ref_logp[:1]), atol=2e-2, rtol=2e-2)
    np.testing.assert_allclose(np.asarray(attn1), np.asarray(ref_attn[:1]), atol=2e-2, rtol=2e-2)

    print("KERNEL_OK")
</pallas_src>

<mosaic_0001>
module attributes {stable_mosaic.version = 11 : i64} {
  func.func @attn_decoder_fused_kernel(%arg0: memref<8x32xf32, #tpu.memory_space<vmem>>, %arg1: memref<1x32xf32, #tpu.memory_space<vmem>>, %arg2: memref<8x32xf32, #tpu.memory_space<vmem>>, %arg3: memref<192x128xbf16, #tpu.memory_space<vmem>>, %arg4: memref<8x128xf32, #tpu.memory_space<vmem>>, %arg5: memref<8x128xf32, #tpu.memory_space<vmem>>, %arg6: memref<1x32xf32, #tpu.memory_space<vmem>>, %arg7: memref<8x8xf32, #tpu.memory_space<vmem>>, %arg8: memref<8x128xf32, #tpu.memory_space<vmem>>, %arg9: memref<8x128xf32, #tpu.memory_space<vmem>>, %arg10: memref<8x32xf32, #tpu.memory_space<vmem>>) attributes {dimension_semantics = [], scalar_prefetch = 0 : i64, scratch_operands = 3 : i64, tpu.core_type = #tpu.core_type<tc>} {
    %c64 = arith.constant 64 : index
    %c0 = arith.constant 0 : index
    %0 = vector.load %arg3[%c64, %c0] : memref<192x128xbf16, #tpu.memory_space<vmem>>, vector<32x128xbf16>
    %c96 = arith.constant 96 : index
    %c0_0 = arith.constant 0 : index
    %1 = vector.load %arg3[%c96, %c0_0] : memref<192x128xbf16, #tpu.memory_space<vmem>>, vector<32x128xbf16>
    %c2 = arith.constant 2 : index
    %c0_1 = arith.constant 0 : index
    %2 = vector.load %arg4[%c2, %c0_1] : memref<8x128xf32, #tpu.memory_space<vmem>>, vector<1x128xf32>
    %c3 = arith.constant 3 : index
    %c0_2 = arith.constant 0 : index
    %3 = vector.load %arg4[%c3, %c0_2] : memref<8x128xf32, #tpu.memory_space<vmem>>, vector<1x128xf32>
    %c0_3 = arith.constant 0 : index
    %c0_4 = arith.constant 0 : index
    %4 = vector.load %arg0[%c0_3, %c0_4] : memref<8x32xf32, #tpu.memory_space<vmem>>, vector<8x32xf32>
    %5 = arith.truncf %4 : vector<8x32xf32> to vector<8x32xbf16>
    %c0_5 = arith.constant 0 : index
    %c0_6 = arith.constant 0 : index
    %6 = vector.load %arg3[%c0_5, %c0_6] : memref<192x128xbf16, #tpu.memory_space<vmem>>, vector<32x128xbf16>
    %cst = arith.constant dense<0.000000e+00> : vector<8x128xf32>
    %7 = tpu.matmul %5, %6, %cst {dimension_numbers = #tpu.dot_dimension_numbers<[1], [0], [0], [1], [0, 0, 1, 1], [], []>} : vector<8x32xbf16>, vector<32x128xbf16>, vector<8x128xf32> -> vector<8x128xf32>
    %c0_7 = arith.constant 0 : index
    %c0_8 = arith.constant 0 : index
    %8 = vector.load %arg4[%c0_7, %c0_8] : memref<8x128xf32, #tpu.memory_space<vmem>>, vector<1x128xf32>
    %9 = vector.broadcast %8 : vector<1x128xf32> to vector<8x128xf32>
    %10 = arith.addf %7, %9 : vector<8x128xf32>
    %c0_9 = arith.constant 0 : index
    %c0_10 = arith.constant 0 : index
    %11 = vector.load %arg8[%c0_9, %c0_10] : memref<8x128xf32, #tpu.memory_space<vmem>>, vector<8x128xf32>
    tpu.vector_store %arg8[%c0_9, %c0_10], %10 {strides = array<i32>} : memref<8x128xf32, #tpu.memory_space<vmem>>, vector<8x128xf32>,
    %c32 = arith.constant 32 : index
    %c0_11 = arith.constant 0 : index
    %12 = vector.load %arg3[%c32, %c0_11] : memref<192x128xbf16, #tpu.memory_space<vmem>>, vector<32x128xbf16>
    %cst_12 = arith.constant dense<0.000000e+00> : vector<8x128xf32>
    %13 = tpu.matmul %5, %12, %cst_12 {dimension_numbers = #tpu.dot_dimension_numbers<[1], [0], [0], [1], [0, 0, 1, 1], [], []>} : vector<8x32xbf16>, vector<32x128xbf16>, vector<8x128xf32> -> vector<8x128xf32>
    %c1 = arith.constant 1 : index
    %c0_13 = arith.constant 0 : index
    %14 = vector.load %arg4[%c1, %c0_13] : memref<8x128xf32, #tpu.memory_space<vmem>>, vector<1x128xf32>
    %15 = vector.broadcast %14 : vector<1x128xf32> to vector<8x128xf32>
    %16 = arith.addf %13, %15 : vector<8x128xf32>
    %c0_14 = arith.constant 0 : index
    %c0_15 = arith.constant 0 : index
    %17 = vector.load %arg9[%c0_14, %c0_15] : memref<8x128xf32, #tpu.memory_space<vmem>>, vector<8x128xf32>
    tpu.vector_store %arg9[%c0_14, %c0_15], %16 {strides = array<i32>} : memref<8x128xf32, #tpu.memory_space<vmem>>, vector<8x128xf32>,
    %c0_16 = arith.constant 0 : index
    %c0_17 = arith.constant 0 : index
    %18 = vector.load %arg2[%c0_16, %c0_17] : memref<8x32xf32, #tpu.memory_space<vmem>>, vector<8x32xf32>
    %19 = arith.truncf %18 : vector<8x32xf32> to vector<8x32xbf16>
    %c128 = arith.constant 128 : index
    %c0_18 = arith.constant 0 : index
    %20 = vector.load %arg3[%c128, %c0_18] : memref<192x128xbf16, #tpu.memory_space<vmem>>, vector<32x128xbf16>
    %cst_19 = arith.constant dense<0.000000e+00> : vector<8x128xf32>
    %21 = tpu.matmul %19, %20, %cst_19 {dimension_numbers = #tpu.dot_dimension_numbers<[1], [0], [0], [1], [0, 0, 1, 1], [], []>} : vector<8x32xbf16>, vector<32x128xbf16>, vector<8x128xf32> -> vector<8x128xf32>
    %22 = arith.truncf %21 : vector<8x128xf32> to vector<8x128xbf16>
    %c0_20 = arith.constant 0 : index
    %c0_21 = arith.constant 0 : index
    %23 = vector.load %arg1[%c0_20, %c0_21] : memref<1x32xf32, #tpu.memory_space<vmem>>, vector<1x32xf32>
    %c0_i32 = arith.constant 0 : i32
    %24 = arith.truncf %23 : vector<1x32xf32> to vector<1x32xbf16>
    %cst_22 = arith.constant dense<0.000000e+00> : vector<1x128xf32>
    %25 = tpu.matmul %24, %0, %cst_22 {dimension_numbers = #tpu.dot_dimension_numbers<[1], [0], [0], [1], [0, 0, 1, 1], [], []>} : vector<1x32xbf16>, vector<32x128xbf16>, vector<1x128xf32> -> vector<1x128xf32>
    %26 = arith.addf %25, %2 : vector<1x128xf32>
    %27 = arith.index_cast %c0_i32 : i32 to index
    %c0_23 = arith.constant 0 : index
    %28 = vector.load %arg8[%27, %c0_23] : memref<8x128xf32, #tpu.memory_space<vmem>>, vector<1x128xf32>
    %29 = vector.extract_strided_slice %28 {offsets = [0, 0], sizes = [1, 8], strides = [1, 1]} : vector<1x128xf32> to vector<1x8xf32>
    %30 = vector.extract_strided_slice %26 {offsets = [0, 96], sizes = [1, 8], strides = [1, 1]} : vector<1x128xf32> to vector<1x8xf32>
    %31 = arith.addf %29, %30 : vector<1x8xf32>
    %cst_24 = arith.constant dense<0xFF800000> : vector<1xf32>
    %32 = vector.multi_reduction <maximumf>, %31, %cst_24 [1] : vector<1x8xf32> to vector<1xf32>
    %33 = vector.shape_cast %32 : vector<1xf32> to vector<1x1xf32>
    %34 = vector.broadcast %33 : vector<1x1xf32> to vector<1x8xf32>
    %35 = arith.subf %31, %34 : vector<1x8xf32>
    %36 = math.exp %35 : vector<1x8xf32>
    %cst_25 = arith.constant dense<0.000000e+00> : vector<1xf32>
    %37 = vector.multi_reduction <add>, %36, %cst_25 [1] : vector<1x8xf32> to vector<1xf32>
    %38 = vector.shape_cast %37 : vector<1xf32> to vector<1x1xf32>
    %39 = vector.broadcast %38 : vector<1x1xf32> to vector<1x8xf32>
    %40 = arith.divf %36, %39 : vector<1x8xf32>
    %41 = arith.index_cast %c0_i32 : i32 to index
    %c0_26 = arith.constant 0 : index
    %42 = vector.load %arg7[%41, %c0_26] : memref<8x8xf32, #tpu.memory_space<vmem>>, vector<1x8xf32>
    tpu.vector_store %arg7[%41, %c0_26], %40 {strides = array<i32>} : memref<8x8xf32, #tpu.memory_space<vmem>>, vector<1x8xf32>,
    %43 = arith.truncf %40 : vector<1x8xf32> to vector<1x8xbf16>
    %cst_27 = arith.constant dense<0.000000e+00> : vector<1x128xf32>
    %44 = tpu.matmul %43, %22, %cst_27 {dimension_numbers = #tpu.dot_dimension_numbers<[1], [0], [0], [1], [0, 0, 1, 1], [], []>} : vector<1x8xbf16>, vector<8x128xbf16>, vector<1x128xf32> -> vector<1x128xf32>
    %45 = arith.index_cast %c0_i32 : i32 to index
    %c0_28 = arith.constant 0 : index
    %46 = vector.load %arg9[%45, %c0_28] : memref<8x128xf32, #tpu.memory_space<vmem>>, vector<1x128xf32>
    %47 = arith.addf %46, %44 : vector<1x128xf32>
    %cst_29 = arith.constant 0.000000e+00 : f32
    %48 = vector.broadcast %cst_29 : f32 to vector<1x128xf32>
    %49 = arith.maximumf %47, %48 : vector<1x128xf32>
    %50 = vector.extract_strided_slice %49 {offsets = [0, 0], sizes = [1, 32], strides = [1, 1]} : vector<1x128xf32> to vector<1x32xf32>
    %51 = arith.truncf %50 : vector<1x32xf32> to vector<1x32xbf16>
    %cst_30 = arith.constant dense<0.000000e+00> : vector<1x128xf32>
    %52 = tpu.matmul %51, %1, %cst_30 {dimension_numbers = #tpu.dot_dimension_numbers<[1], [0], [0], [1], [0, 0, 1, 1], [], []>} : vector<1x32xbf16>, vector<32x128xbf16>, vector<1x128xf32> -> vector<1x128xf32>
    %53 = arith.addf %52, %3 : vector<1x128xf32>
    %54 = vector.extract_strided_slice %53 {offsets = [0, 0], sizes = [1, 32], strides = [1, 1]} : vector<1x128xf32> to vector<1x32xf32>
    %55 = vector.extract_strided_slice %26 {offsets = [0, 0], sizes = [1, 32], strides = [1, 1]} : vector<1x128xf32> to vector<1x32xf32>
    %56 = arith.addf %54, %55 : vector<1x32xf32>
    %57 = arith.negf %56 : vector<1x32xf32>
    %58 = math.exp %57 : vector<1x32xf32>
    %cst_31 = arith.constant 1.000000e+00 : f32
    %59 = vector.broadcast %cst_31 : f32 to vector<1x32xf32>
    %60 = arith.addf %59, %58 : vector<1x32xf32>
    %61 = arith.divf %59, %60 : vector<1x32xf32>
    %62 = vector.extract_strided_slice %53 {offsets = [0, 32], sizes = [1, 32], strides = [1, 1]} : vector<1x128xf32> to vector<1x32xf32>
    %63 = vector.extract_strided_slice %26 {offsets = [0, 32], sizes = [1, 32], strides = [1, 1]} : vector<1x128xf32> to vector<1x32xf32>
    %64 = arith.addf %62, %63 : vector<1x32xf32>
    %65 = arith.negf %64 : vector<1x32xf32>
    %66 = math.exp %65 : vector<1x32xf32>
    %cst_32 = arith.constant 1.000000e+00 : f32
    %67 = vector.broadcast %cst_32 : f32 to vector<1x32xf32>
    %68 = arith.addf %67, %66 : vector<1x32xf32>
    %69 = arith.divf %67, %68 : vector<1x32xf32>
    %70 = vector.extract_strided_slice %53 {offsets = [0, 64], sizes = [1, 32], strides = [1, 1]} : vector<1x128xf32> to vector<1x32xf32>
    %71 = vector.extract_strided_slice %26 {offsets = [0, 64], sizes = [1, 32], strides = [1, 1]} : vector<1x128xf32> to vector<1x32xf32>
    %72 = arith.mulf %61, %71 : vector<1x32xf32>
    %73 = arith.addf %70, %72 : vector<1x32xf32>
    %74 = math.tanh %73 : vector<1x32xf32>
    %cst_33 = arith.constant 1.000000e+00 : f32
    %75 = vector.broadcast %cst_33 : f32 to vector<1x32xf32>
    %76 = arith.subf %75, %69 : vector<1x32xf32>
    %77 = arith.mulf %76, %74 : vector<1x32xf32>
    %78 = arith.mulf %69, %23 : vector<1x32xf32>
    %79 = arith.addf %77, %78 : vector<1x32xf32>
    %80 = arith.index_cast %c0_i32 : i32 to index
    %c0_34 = arith.constant 0 : index
    %81 = vector.load %arg10[%80, %c0_34] : memref<8x32xf32, #tpu.memory_space<vmem>>, vector<1x32xf32>
    tpu.vector_store %arg10[%80, %c0_34], %79 {strides = array<i32>} : memref<8x32xf32, #tpu.memory_space<vmem>>, vector<1x32xf32>,
    %c1_i32 = arith.constant 1 : i32
    %82 = arith.truncf %79 : vector<1x32xf32> to vector<1x32xbf16>
    %cst_35 = arith.constant dense<0.000000e+00> : vector<1x128xf32>
    %83 = tpu.matmul %82, %0, %cst_35 {dimension_numbers = #tpu.dot_dimension_numbers<[1], [0], [0], [1], [0, 0, 1, 1], [], []>} : vector<1x32xbf16>, vector<32x128xbf16>, vector<1x128xf32> -> vector<1x128xf32>
    %84 = arith.addf %83, %2 : vector<1x128xf32>
    %85 = arith.index_cast %c1_i32 : i32 to index
    %c0_36 = arith.constant 0 : index
    %86 = vector.load %arg8[%85, %c0_36] : memref<8x128xf32, #tpu.memory_space<vmem>>, vector<1x128xf32>
    %87 = vector.extract_strided_slice %86 {offsets = [0, 0], sizes = [1, 8], strides = [1, 1]} : vector<1x128xf32> to vector<1x8xf32>
    %88 = vector.extract_strided_slice %84 {offsets = [0, 96], sizes = [1, 8], strides = [1, 1]} : vector<1x128xf32> to vector<1x8xf32>
    %89 = arith.addf %87, %88 : vector<1x8xf32>
    %cst_37 = arith.constant dense<0xFF800000> : vector<1xf32>
    %90 = vector.multi_reduction <maximumf>, %89, %cst_37 [1] : vector<1x8xf32> to vector<1xf32>
    %91 = vector.shape_cast %90 : vector<1xf32> to vector<1x1xf32>
    %92 = vector.broadcast %91 : vector<1x1xf32> to vector<1x8xf32>
    %93 = arith.subf %89, %92 : vector<1x8xf32>
    %94 = math.exp %93 : vector<1x8xf32>
    %cst_38 = arith.constant dense<0.000000e+00> : vector<1xf32>
    %95 = vector.multi_reduction <add>, %94, %cst_38 [1] : vector<1x8xf32> to vector<1xf32>
    %96 = vector.shape_cast %95 : vector<1xf32> to vector<1x1xf32>
    %97 = vector.broadcast %96 : vector<1x1xf32> to vector<1x8xf32>
    %98 = arith.divf %94, %97 : vector<1x8xf32>
    %99 = arith.index_cast %c1_i32 : i32 to index
    %c0_39 = arith.constant 0 : index
    %100 = vector.load %arg7[%99, %c0_39] : memref<8x8xf32, #tpu.memory_space<vmem>>, vector<1x8xf32>
    tpu.vector_store %arg7[%99, %c0_39], %98 {strides = array<i32>} : memref<8x8xf32, #tpu.memory_space<vmem>>, vector<1x8xf32>,
    %101 = arith.truncf %98 : vector<1x8xf32> to vector<1x8xbf16>
    %cst_40 = arith.constant dense<0.000000e+00> : vector<1x128xf32>
    %102 = tpu.matmul %101, %22, %cst_40 {dimension_numbers = #tpu.dot_dimension_numbers<[1], [0], [0], [1], [0, 0, 1, 1], [], []>} : vector<1x8xbf16>, vector<8x128xbf16>, vector<1x128xf32> -> vector<1x128xf32>
    %103 = arith.index_cast %c1_i32 : i32 to index
    %c0_41 = arith.constant 0 : index
    %104 = vector.load %arg9[%103, %c0_41] : memref<8x128xf32, #tpu.memory_space<vmem>>, vector<1x128xf32>
    %105 = arith.addf %104, %102 : vector<1x128xf32>
    %cst_42 = arith.constant 0.000000e+00 : f32
    %106 = vector.broadcast %cst_42 : f32 to vector<1x128xf32>
    %107 = arith.maximumf %105, %106 : vector<1x128xf32>
    %108 = vector.extract_strided_slice %107 {offsets = [0, 0], sizes = [1, 32], strides = [1, 1]} : vector<1x128xf32> to vector<1x32xf32>
    %109 = arith.truncf %108 : vector<1x32xf32> to vector<1x32xbf16>
    %cst_43 = arith.constant dense<0.000000e+00> : vector<1x128xf32>
    %110 = tpu.matmul %109, %1, %cst_43 {dimension_numbers = #tpu.dot_dimension_numbers<[1], [0], [0], [1], [0, 0, 1, 1], [], []>} : vector<1x32xbf16>, vector<32x128xbf16>, vector<1x128xf32> -> vector<1x128xf32>
    %111 = arith.addf %110, %3 : vector<1x128xf32>
    %112 = vector.extract_strided_slice %111 {offsets = [0, 0], sizes = [1, 32], strides = [1, 1]} : vector<1x128xf32> to vector<1x32xf32>
    %113 = vector.extract_strided_slice %84 {offsets = [0, 0], sizes = [1, 32], strides = [1, 1]} : vector<1x128xf32> to vector<1x32xf32>
    %114 = arith.addf %112, %113 : vector<1x32xf32>
    %115 = arith.negf %114 : vector<1x32xf32>
    %116 = math.exp %115 : vector<1x32xf32>
    %cst_44 = arith.constant 1.000000e+00 : f32
    %117 = vector.broadcast %cst_44 : f32 to vector<1x32xf32>
    %118 = arith.addf %117, %116 : vector<1x32xf32>
    %119 = arith.divf %117, %118 : vector<1x32xf32>
    %120 = vector.extract_strided_slice %111 {offsets = [0, 32], sizes = [1, 32], strides = [1, 1]} : vector<1x128xf32> to vector<1x32xf32>
    %121 = vector.extract_strided_slice %84 {offsets = [0, 32], sizes = [1, 32], strides = [1, 1]} : vector<1x128xf32> to vector<1x32xf32>
    %122 = arith.addf %120, %121 : vector<1x32xf32>
    %123 = arith.negf %122 : vector<1x32xf32>
    %124 = math.exp %123 : vector<1x32xf32>
    %cst_45 = arith.constant 1.000000e+00 : f32
    %125 = vector.broadcast %cst_45 : f32 to vector<1x32xf32>
    %126 = arith.addf %125, %124 : vector<1x32xf32>
    %127 = arith.divf %125, %126 : vector<1x32xf32>
    %128 = vector.extract_strided_slice %111 {offsets = [0, 64], sizes = [1, 32], strides = [1, 1]} : vector<1x128xf32> to vector<1x32xf32>
    %129 = vector.extract_strided_slice %84 {offsets = [0, 64], sizes = [1, 32], strides = [1, 1]} : vector<1x128xf32> to vector<1x32xf32>
    %130 = arith.mulf %119, %129 : vector<1x32xf32>
    %131 = arith.addf %128, %130 : vector<1x32xf32>
    %132 = math.tanh %131 : vector<1x32xf32>
    %cst_46 = arith.constant 1.000000e+00 : f32
    %133 = vector.broadcast %cst_46 : f32 to vector<1x32xf32>
    %134 = arith.subf %133, %127 : vector<1x32xf32>
    %135 = arith.mulf %134, %132 : vector<1x32xf32>
    %136 = arith.mulf %127, %79 : vector<1x32xf32>
    %137 = arith.addf %135, %136 : vector<1x32xf32>
    %138 = arith.index_cast %c1_i32 : i32 to index
    %c0_47 = arith.constant 0 : index
    %139 = vector.load %arg10[%138, %c0_47] : memref<8x32xf32, #tpu.memory_space<vmem>>, vector<1x32xf32>
    tpu.vector_store %arg10[%138, %c0_47], %137 {strides = array<i32>} : memref<8x32xf32, #tpu.memory_space<vmem>>, vector<1x32xf32>,
    %c2_i32 = arith.constant 2 : i32
    %140 = arith.truncf %137 : vector<1x32xf32> to vector<1x32xbf16>
    %cst_48 = arith.constant dense<0.000000e+00> : vector<1x128xf32>
    %141 = tpu.matmul %140, %0, %cst_48 {dimension_numbers = #tpu.dot_dimension_numbers<[1], [0], [0], [1], [0, 0, 1, 1], [], []>} : vector<1x32xbf16>, vector<32x128xbf16>, vector<1x128xf32> -> vector<1x128xf32>
    %142 = arith.addf %141, %2 : vector<1x128xf32>
    %143 = arith.index_cast %c2_i32 : i32 to index
    %c0_49 = arith.constant 0 : index
    %144 = vector.load %arg8[%143, %c0_49] : memref<8x128xf32, #tpu.memory_space<vmem>>, vector<1x128xf32>
    %145 = vector.extract_strided_slice %144 {offsets = [0, 0], sizes = [1, 8], strides = [1, 1]} : vector<1x128xf32> to vector<1x8xf32>
    %146 = vector.extract_strided_slice %142 {offsets = [0, 96], sizes = [1, 8], strides = [1, 1]} : vector<1x128xf32> to vector<1x8xf32>
    %147 = arith.addf %145, %146 : vector<1x8xf32>
    %cst_50 = arith.constant dense<0xFF800000> : vector<1xf32>
    %148 = vector.multi_reduction <maximumf>, %147, %cst_50 [1] : vector<1x8xf32> to vector<1xf32>
    %149 = vector.shape_cast %148 : vector<1xf32> to vector<1x1xf32>
    %150 = vector.broadcast %149 : vector<1x1xf32> to vector<1x8xf32>
    %151 = arith.subf %147, %150 : vector<1x8xf32>
    %152 = math.exp %151 : vector<1x8xf32>
    %cst_51 = arith.constant dense<0.000000e+00> : vector<1xf32>
    %153 = vector.multi_reduction <add>, %152, %cst_51 [1] : vector<1x8xf32> to vector<1xf32>
    %154 = vector.shape_cast %153 : vector<1xf32> to vector<1x1xf32>
    %155 = vector.broadcast %154 : vector<1x1xf32> to vector<1x8xf32>
    %156 = arith.divf %152, %155 : vector<1x8xf32>
    %157 = arith.index_cast %c2_i32 : i32 to index
    %c0_52 = arith.constant 0 : index
    %158 = vector.load %arg7[%157, %c0_52] : memref<8x8xf32, #tpu.memory_space<vmem>>, vector<1x8xf32>
    tpu.vector_store %arg7[%157, %c0_52], %156 {strides = array<i32>} : memref<8x8xf32, #tpu.memory_space<vmem>>, vector<1x8xf32>,
    %159 = arith.truncf %156 : vector<1x8xf32> to vector<1x8xbf16>
    %cst_53 = arith.constant dense<0.000000e+00> : vector<1x128xf32>
    %160 = tpu.matmul %159, %22, %cst_53 {dimension_numbers = #tpu.dot_dimension_numbers<[1], [0], [0], [1], [0, 0, 1, 1], [], []>} : vector<1x8xbf16>, vector<8x128xbf16>, vector<1x128xf32> -> vector<1x128xf32>
    %161 = arith.index_cast %c2_i32 : i32 to index
    %c0_54 = arith.constant 0 : index
    %162 = vector.load %arg9[%161, %c0_54] : memref<8x128xf32, #tpu.memory_space<vmem>>, vector<1x128xf32>
    %163 = arith.addf %162, %160 : vector<1x128xf32>
    %cst_55 = arith.constant 0.000000e+00 : f32
    %164 = vector.broadcast %cst_55 : f32 to vector<1x128xf32>
    %165 = arith.maximumf %163, %164 : vector<1x128xf32>
    %166 = vector.extract_strided_slice %165 {offsets = [0, 0], sizes = [1, 32], strides = [1, 1]} : vector<1x128xf32> to vector<1x32xf32>
    %167 = arith.truncf %166 : vector<1x32xf32> to vector<1x32xbf16>
    %cst_56 = arith.constant dense<0.000000e+00> : vector<1x128xf32>
    %168 = tpu.matmul %167, %1, %cst_56 {dimension_numbers = #tpu.dot_dimension_numbers<[1], [0], [0], [1], [0, 0, 1, 1], [], []>} : vector<1x32xbf16>, vector<32x128xbf16>, vector<1x128xf32> -> vector<1x128xf32>
    %169 = arith.addf %168, %3 : vector<1x128xf32>
    %170 = vector.extract_strided_slice %169 {offsets = [0, 0], sizes = [1, 32], strides = [1, 1]} : vector<1x128xf32> to vector<1x32xf32>
    %171 = vector.extract_strided_slice %142 {offsets = [0, 0], sizes = [1, 32], strides = [1, 1]} : vector<1x128xf32> to vector<1x32xf32>
    %172 = arith.addf %170, %171 : vector<1x32xf32>
    %173 = arith.negf %172 : vector<1x32xf32>
    %174 = math.exp %173 : vector<1x32xf32>
    %cst_57 = arith.constant 1.000000e+00 : f32
    %175 = vector.broadcast %cst_57 : f32 to vector<1x32xf32>
    %176 = arith.addf %175, %174 : vector<1x32xf32>
    %177 = arith.divf %175, %176 : vector<1x32xf32>
    %178 = vector.extract_strided_slice %169 {offsets = [0, 32], sizes = [1, 32], strides = [1, 1]} : vector<1x128xf32> to vector<1x32xf32>
    %179 = vector.extract_strided_slice %142 {offsets = [0, 32], sizes = [1, 32], strides = [1, 1]} : vector<1x128xf32> to vector<1x32xf32>
    %180 = arith.addf %178, %179 : vector<1x32xf32>
    %181 = arith.negf %180 : vector<1x32xf32>
    %182 = math.exp %181 : vector<1x32xf32>
    %cst_58 = arith.constant 1.000000e+00 : f32
    %183 = vector.broadcast %cst_58 : f32 to vector<1x32xf32>
    %184 = arith.addf %183, %182 : vector<1x32xf32>
    %185 = arith.divf %183, %184 : vector<1x32xf32>
    %186 = vector.extract_strided_slice %169 {offsets = [0, 64], sizes = [1, 32], strides = [1, 1]} : vector<1x128xf32> to vector<1x32xf32>
    %187 = vector.extract_strided_slice %142 {offsets = [0, 64], sizes = [1, 32], strides = [1, 1]} : vector<1x128xf32> to vector<1x32xf32>
    %188 = arith.mulf %177, %187 : vector<1x32xf32>
    %189 = arith.addf %186, %188 : vector<1x32xf32>
    %190 = math.tanh %189 : vector<1x32xf32>
    %cst_59 = arith.constant 1.000000e+00 : f32
    %191 = vector.broadcast %cst_59 : f32 to vector<1x32xf32>
    %192 = arith.subf %191, %185 : vector<1x32xf32>
    %193 = arith.mulf %192, %190 : vector<1x32xf32>
    %194 = arith.mulf %185, %137 : vector<1x32xf32>
    %195 = arith.addf %193, %194 : vector<1x32xf32>
    %196 = arith.index_cast %c2_i32 : i32 to index
    %c0_60 = arith.constant 0 : index
    %197 = vector.load %arg10[%196, %c0_60] : memref<8x32xf32, #tpu.memory_space<vmem>>, vector<1x32xf32>
    tpu.vector_store %arg10[%196, %c0_60], %195 {strides = array<i32>} : memref<8x32xf32, #tpu.memory_space<vmem>>, vector<1x32xf32>,
    %c3_i32 = arith.constant 3 : i32
    %198 = arith.truncf %195 : vector<1x32xf32> to vector<1x32xbf16>
    %cst_61 = arith.constant dense<0.000000e+00> : vector<1x128xf32>
    %199 = tpu.matmul %198, %0, %cst_61 {dimension_numbers = #tpu.dot_dimension_numbers<[1], [0], [0], [1], [0, 0, 1, 1], [], []>} : vector<1x32xbf16>, vector<32x128xbf16>, vector<1x128xf32> -> vector<1x128xf32>
    %200 = arith.addf %199, %2 : vector<1x128xf32>
    %201 = arith.index_cast %c3_i32 : i32 to index
    %c0_62 = arith.constant 0 : index
    %202 = vector.load %arg8[%201, %c0_62] : memref<8x128xf32, #tpu.memory_space<vmem>>, vector<1x128xf32>
    %203 = vector.extract_strided_slice %202 {offsets = [0, 0], sizes = [1, 8], strides = [1, 1]} : vector<1x128xf32> to vector<1x8xf32>
    %204 = vector.extract_strided_slice %200 {offsets = [0, 96], sizes = [1, 8], strides = [1, 1]} : vector<1x128xf32> to vector<1x8xf32>
    %205 = arith.addf %203, %204 : vector<1x8xf32>
    %cst_63 = arith.constant dense<0xFF800000> : vector<1xf32>
    %206 = vector.multi_reduction <maximumf>, %205, %cst_63 [1] : vector<1x8xf32> to vector<1xf32>
    %207 = vector.shape_cast %206 : vector<1xf32> to vector<1x1xf32>
    %208 = vector.broadcast %207 : vector<1x1xf32> to vector<1x8xf32>
    %209 = arith.subf %205, %208 : vector<1x8xf32>
    %210 = math.exp %209 : vector<1x8xf32>
    %cst_64 = arith.constant dense<0.000000e+00> : vector<1xf32>
    %211 = vector.multi_reduction <add>, %210, %cst_64 [1] : vector<1x8xf32> to vector<1xf32>
    %212 = vector.shape_cast %211 : vector<1xf32> to vector<1x1xf32>
    %213 = vector.broadcast %212 : vector<1x1xf32> to vector<1x8xf32>
    %214 = arith.divf %210, %213 : vector<1x8xf32>
    %215 = arith.index_cast %c3_i32 : i32 to index
    %c0_65 = arith.constant 0 : index
    %216 = vector.load %arg7[%215, %c0_65] : memref<8x8xf32, #tpu.memory_space<vmem>>, vector<1x8xf32>
    tpu.vector_store %arg7[%215, %c0_65], %214 {strides = array<i32>} : memref<8x8xf32, #tpu.memory_space<vmem>>, vector<1x8xf32>,
    %217 = arith.truncf %214 : vector<1x8xf32> to vector<1x8xbf16>
    %cst_66 = arith.constant dense<0.000000e+00> : vector<1x128xf32>
    %218 = tpu.matmul %217, %22, %cst_66 {dimension_numbers = #tpu.dot_dimension_numbers<[1], [0], [0], [1], [0, 0, 1, 1], [], []>} : vector<1x8xbf16>, vector<8x128xbf16>, vector<1x128xf32> -> vector<1x128xf32>
    %219 = arith.index_cast %c3_i32 : i32 to index
    %c0_67 = arith.constant 0 : index
    %220 = vector.load %arg9[%219, %c0_67] : memref<8x128xf32, #tpu.memory_space<vmem>>, vector<1x128xf32>
    %221 = arith.addf %220, %218 : vector<1x128xf32>
    %cst_68 = arith.constant 0.000000e+00 : f32
    %222 = vector.broadcast %cst_68 : f32 to vector<1x128xf32>
    %223 = arith.maximumf %221, %222 : vector<1x128xf32>
    %224 = vector.extract_strided_slice %223 {offsets = [0, 0], sizes = [1, 32], strides = [1, 1]} : vector<1x128xf32> to vector<1x32xf32>
    %225 = arith.truncf %224 : vector<1x32xf32> to vector<1x32xbf16>
    %cst_69 = arith.constant dense<0.000000e+00> : vector<1x128xf32>
    %226 = tpu.matmul %225, %1, %cst_69 {dimension_numbers = #tpu.dot_dimension_numbers<[1], [0], [0], [1], [0, 0, 1, 1], [], []>} : vector<1x32xbf16>, vector<32x128xbf16>, vector<1x128xf32> -> vector<1x128xf32>
    %227 = arith.addf %226, %3 : vector<1x128xf32>
    %228 = vector.extract_strided_slice %227 {offsets = [0, 0], sizes = [1, 32], strides = [1, 1]} : vector<1x128xf32> to vector<1x32xf32>
    %229 = vector.extract_strided_slice %200 {offsets = [0, 0], sizes = [1, 32], strides = [1, 1]} : vector<1x128xf32> to vector<1x32xf32>
    %230 = arith.addf %228, %229 : vector<1x32xf32>
    %231 = arith.negf %230 : vector<1x32xf32>
    %232 = math.exp %231 : vector<1x32xf32>
    %cst_70 = arith.constant 1.000000e+00 : f32
    %233 = vector.broadcast %cst_70 : f32 to vector<1x32xf32>
    %234 = arith.addf %233, %232 : vector<1x32xf32>
    %235 = arith.divf %233, %234 : vector<1x32xf32>
    %236 = vector.extract_strided_slice %227 {offsets = [0, 32], sizes = [1, 32], strides = [1, 1]} : vector<1x128xf32> to vector<1x32xf32>
    %237 = vector.extract_strided_slice %200 {offsets = [0, 32], sizes = [1, 32], strides = [1, 1]} : vector<1x128xf32> to vector<1x32xf32>
    %238 = arith.addf %236, %237 : vector<1x32xf32>
    %239 = arith.negf %238 : vector<1x32xf32>
    %240 = math.exp %239 : vector<1x32xf32>
    %cst_71 = arith.constant 1.000000e+00 : f32
    %241 = vector.broadcast %cst_71 : f32 to vector<1x32xf32>
    %242 = arith.addf %241, %240 : vector<1x32xf32>
    %243 = arith.divf %241, %242 : vector<1x32xf32>
    %244 = vector.extract_strided_slice %227 {offsets = [0, 64], sizes = [1, 32], strides = [1, 1]} : vector<1x128xf32> to vector<1x32xf32>
    %245 = vector.extract_strided_slice %200 {offsets = [0, 64], sizes = [1, 32], strides = [1, 1]} : vector<1x128xf32> to vector<1x32xf32>
    %246 = arith.mulf %235, %245 : vector<1x32xf32>
    %247 = arith.addf %244, %246 : vector<1x32xf32>
    %248 = math.tanh %247 : vector<1x32xf32>
    %cst_72 = arith.constant 1.000000e+00 : f32
    %249 = vector.broadcast %cst_72 : f32 to vector<1x32xf32>
    %250 = arith.subf %249, %243 : vector<1x32xf32>
    %251 = arith.mulf %250, %248 : vector<1x32xf32>
    %252 = arith.mulf %243, %195 : vector<1x32xf32>
    %253 = arith.addf %251, %252 : vector<1x32xf32>
    %254 = arith.index_cast %c3_i32 : i32 to index
    %c0_73 = arith.constant 0 : index
    %255 = vector.load %arg10[%254, %c0_73] : memref<8x32xf32, #tpu.memory_space<vmem>>, vector<1x32xf32>
    tpu.vector_store %arg10[%254, %c0_73], %253 {strides = array<i32>} : memref<8x32xf32, #tpu.memory_space<vmem>>, vector<1x32xf32>,
    %c4_i32 = arith.constant 4 : i32
    %256 = arith.truncf %253 : vector<1x32xf32> to vector<1x32xbf16>
    %cst_74 = arith.constant dense<0.000000e+00> : vector<1x128xf32>
    %257 = tpu.matmul %256, %0, %cst_74 {dimension_numbers = #tpu.dot_dimension_numbers<[1], [0], [0], [1], [0, 0, 1, 1], [], []>} : vector<1x32xbf16>, vector<32x128xbf16>, vector<1x128xf32> -> vector<1x128xf32>
    %258 = arith.addf %257, %2 : vector<1x128xf32>
    %259 = arith.index_cast %c4_i32 : i32 to index
    %c0_75 = arith.constant 0 : index
    %260 = vector.load %arg8[%259, %c0_75] : memref<8x128xf32, #tpu.memory_space<vmem>>, vector<1x128xf32>
    %261 = vector.extract_strided_slice %260 {offsets = [0, 0], sizes = [1, 8], strides = [1, 1]} : vector<1x128xf32> to vector<1x8xf32>
    %262 = vector.extract_strided_slice %258 {offsets = [0, 96], sizes = [1, 8], strides = [1, 1]} : vector<1x128xf32> to vector<1x8xf32>
    %263 = arith.addf %261, %262 : vector<1x8xf32>
    %cst_76 = arith.constant dense<0xFF800000> : vector<1xf32>
    %264 = vector.multi_reduction <maximumf>, %263, %cst_76 [1] : vector<1x8xf32> to vector<1xf32>
    %265 = vector.shape_cast %264 : vector<1xf32> to vector<1x1xf32>
    %266 = vector.broadcast %265 : vector<1x1xf32> to vector<1x8xf32>
    %267 = arith.subf %263, %266 : vector<1x8xf32>
    %268 = math.exp %267 : vector<1x8xf32>
    %cst_77 = arith.constant dense<0.000000e+00> : vector<1xf32>
    %269 = vector.multi_reduction <add>, %268, %cst_77 [1] : vector<1x8xf32> to vector<1xf32>
    %270 = vector.shape_cast %269 : vector<1xf32> to vector<1x1xf32>
    %271 = vector.broadcast %270 : vector<1x1xf32> to vector<1x8xf32>
    %272 = arith.divf %268, %271 : vector<1x8xf32>
    %273 = arith.index_cast %c4_i32 : i32 to index
    %c0_78 = arith.constant 0 : index
    %274 = vector.load %arg7[%273, %c0_78] : memref<8x8xf32, #tpu.memory_space<vmem>>, vector<1x8xf32>
    tpu.vector_store %arg7[%273, %c0_78], %272 {strides = array<i32>} : memref<8x8xf32, #tpu.memory_space<vmem>>, vector<1x8xf32>,
    %275 = arith.truncf %272 : vector<1x8xf32> to vector<1x8xbf16>
    %cst_79 = arith.constant dense<0.000000e+00> : vector<1x128xf32>
    %276 = tpu.matmul %275, %22, %cst_79 {dimension_numbers = #tpu.dot_dimension_numbers<[1], [0], [0], [1], [0, 0, 1, 1], [], []>} : vector<1x8xbf16>, vector<8x128xbf16>, vector<1x128xf32> -> vector<1x128xf32>
    %277 = arith.index_cast %c4_i32 : i32 to index
    %c0_80 = arith.constant 0 : index
    %278 = vector.load %arg9[%277, %c0_80] : memref<8x128xf32, #tpu.memory_space<vmem>>, vector<1x128xf32>
    %279 = arith.addf %278, %276 : vector<1x128xf32>
    %cst_81 = arith.constant 0.000000e+00 : f32
    %280 = vector.broadcast %cst_81 : f32 to vector<1x128xf32>
    %281 = arith.maximumf %279, %280 : vector<1x128xf32>
    %282 = vector.extract_strided_slice %281 {offsets = [0, 0], sizes = [1, 32], strides = [1, 1]} : vector<1x128xf32> to vector<1x32xf32>
    %283 = arith.truncf %282 : vector<1x32xf32> to vector<1x32xbf16>
    %cst_82 = arith.constant dense<0.000000e+00> : vector<1x128xf32>
    %284 = tpu.matmul %283, %1, %cst_82 {dimension_numbers = #tpu.dot_dimension_numbers<[1], [0], [0], [1], [0, 0, 1, 1], [], []>} : vector<1x32xbf16>, vector<32x128xbf16>, vector<1x128xf32> -> vector<1x128xf32>
    %285 = arith.addf %284, %3 : vector<1x128xf32>
    %286 = vector.extract_strided_slice %285 {offsets = [0, 0], sizes = [1, 32], strides = [1, 1]} : vector<1x128xf32> to vector<1x32xf32>
    %287 = vector.extract_strided_slice %258 {offsets = [0, 0], sizes = [1, 32], strides = [1, 1]} : vector<1x128xf32> to vector<1x32xf32>
    %288 = arith.addf %286, %287 : vector<1x32xf32>
    %289 = arith.negf %288 : vector<1x32xf32>
    %290 = math.exp %289 : vector<1x32xf32>
    %cst_83 = arith.constant 1.000000e+00 : f32
    %291 = vector.broadcast %cst_83 : f32 to vector<1x32xf32>
    %292 = arith.addf %291, %290 : vector<1x32xf32>
    %293 = arith.divf %291, %292 : vector<1x32xf32>
    %294 = vector.extract_strided_slice %285 {offsets = [0, 32], sizes = [1, 32], strides = [1, 1]} : vector<1x128xf32> to vector<1x32xf32>
    %295 = vector.extract_strided_slice %258 {offsets = [0, 32], sizes = [1, 32], strides = [1, 1]} : vector<1x128xf32> to vector<1x32xf32>
    %296 = arith.addf %294, %295 : vector<1x32xf32>
    %297 = arith.negf %296 : vector<1x32xf32>
    %298 = math.exp %297 : vector<1x32xf32>
    %cst_84 = arith.constant 1.000000e+00 : f32
    %299 = vector.broadcast %cst_84 : f32 to vector<1x32xf32>
    %300 = arith.addf %299, %298 : vector<1x32xf32>
    %301 = arith.divf %299, %300 : vector<1x32xf32>
    %302 = vector.extract_strided_slice %285 {offsets = [0, 64], sizes = [1, 32], strides = [1, 1]} : vector<1x128xf32> to vector<1x32xf32>
    %303 = vector.extract_strided_slice %258 {offsets = [0, 64], sizes = [1, 32], strides = [1, 1]} : vector<1x128xf32> to vector<1x32xf32>
    %304 = arith.mulf %293, %303 : vector<1x32xf32>
    %305 = arith.addf %302, %304 : vector<1x32xf32>
    %306 = math.tanh %305 : vector<1x32xf32>
    %cst_85 = arith.constant 1.000000e+00 : f32
    %307 = vector.broadcast %cst_85 : f32 to vector<1x32xf32>
    %308 = arith.subf %307, %301 : vector<1x32xf32>
    %309 = arith.mulf %308, %306 : vector<1x32xf32>
    %310 = arith.mulf %301, %253 : vector<1x32xf32>
    %311 = arith.addf %309, %310 : vector<1x32xf32>
    %312 = arith.index_cast %c4_i32 : i32 to index
    %c0_86 = arith.constant 0 : index
    %313 = vector.load %arg10[%312, %c0_86] : memref<8x32xf32, #tpu.memory_space<vmem>>, vector<1x32xf32>
    tpu.vector_store %arg10[%312, %c0_86], %311 {strides = array<i32>} : memref<8x32xf32, #tpu.memory_space<vmem>>, vector<1x32xf32>,
    %c5_i32 = arith.constant 5 : i32
    %314 = arith.truncf %311 : vector<1x32xf32> to vector<1x32xbf16>
    %cst_87 = arith.constant dense<0.000000e+00> : vector<1x128xf32>
    %315 = tpu.matmul %314, %0, %cst_87 {dimension_numbers = #tpu.dot_dimension_numbers<[1], [0], [0], [1], [0, 0, 1, 1], [], []>} : vector<1x32xbf16>, vector<32x128xbf16>, vector<1x128xf32> -> vector<1x128xf32>
    %316 = arith.addf %315, %2 : vector<1x128xf32>
    %317 = arith.index_cast %c5_i32 : i32 to index
    %c0_88 = arith.constant 0 : index
    %318 = vector.load %arg8[%317, %c0_88] : memref<8x128xf32, #tpu.memory_space<vmem>>, vector<1x128xf32>
    %319 = vector.extract_strided_slice %318 {offsets = [0, 0], sizes = [1, 8], strides = [1, 1]} : vector<1x128xf32> to vector<1x8xf32>
    %320 = vector.extract_strided_slice %316 {offsets = [0, 96], sizes = [1, 8], strides = [1, 1]} : vector<1x128xf32> to vector<1x8xf32>
    %321 = arith.addf %319, %320 : vector<1x8xf32>
    %cst_89 = arith.constant dense<0xFF800000> : vector<1xf32>
    %322 = vector.multi_reduction <maximumf>, %321, %cst_89 [1] : vector<1x8xf32> to vector<1xf32>
    %323 = vector.shape_cast %322 : vector<1xf32> to vector<1x1xf32>
    %324 = vector.broadcast %323 : vector<1x1xf32> to vector<1x8xf32>
    %325 = arith.subf %321, %324 : vector<1x8xf32>
    %326 = math.exp %325 : vector<1x8xf32>
    %cst_90 = arith.constant dense<0.000000e+00> : vector<1xf32>
    %327 = vector.multi_reduction <add>, %326, %cst_90 [1] : vector<1x8xf32> to vector<1xf32>
    %328 = vector.shape_cast %327 : vector<1xf32> to vector<1x1xf32>
    %329 = vector.broadcast %328 : vector<1x1xf32> to vector<1x8xf32>
    %330 = arith.divf %326, %329 : vector<1x8xf32>
    %331 = arith.index_cast %c5_i32 : i32 to index
    %c0_91 = arith.constant 0 : index
    %332 = vector.load %arg7[%331, %c0_91] : memref<8x8xf32, #tpu.memory_space<vmem>>, vector<1x8xf32>
    tpu.vector_store %arg7[%331, %c0_91], %330 {strides = array<i32>} : memref<8x8xf32, #tpu.memory_space<vmem>>, vector<1x8xf32>,
    %333 = arith.truncf %330 : vector<1x8xf32> to vector<1x8xbf16>
    %cst_92 = arith.constant dense<0.000000e+00> : vector<1x128xf32>
    %334 = tpu.matmul %333, %22, %cst_92 {dimension_numbers = #tpu.dot_dimension_numbers<[1], [0], [0], [1], [0, 0, 1, 1], [], []>} : vector<1x8xbf16>, vector<8x128xbf16>, vector<1x128xf32> -> vector<1x128xf32>
    %335 = arith.index_cast %c5_i32 : i32 to index
    %c0_93 = arith.constant 0 : index
    %336 = vector.load %arg9[%335, %c0_93] : memref<8x128xf32, #tpu.memory_space<vmem>>, vector<1x128xf32>
    %337 = arith.addf %336, %334 : vector<1x128xf32>
    %cst_94 = arith.constant 0.000000e+00 : f32
    %338 = vector.broadcast %cst_94 : f32 to vector<1x128xf32>
    %339 = arith.maximumf %337, %338 : vector<1x128xf32>
    %340 = vector.extract_strided_slice %339 {offsets = [0, 0], sizes = [1, 32], strides = [1, 1]} : vector<1x128xf32> to vector<1x32xf32>
    %341 = arith.truncf %340 : vector<1x32xf32> to vector<1x32xbf16>
    %cst_95 = arith.constant dense<0.000000e+00> : vector<1x128xf32>
    %342 = tpu.matmul %341, %1, %cst_95 {dimension_numbers = #tpu.dot_dimension_numbers<[1], [0], [0], [1], [0, 0, 1, 1], [], []>} : vector<1x32xbf16>, vector<32x128xbf16>, vector<1x128xf32> -> vector<1x128xf32>
    %343 = arith.addf %342, %3 : vector<1x128xf32>
    %344 = vector.extract_strided_slice %343 {offsets = [0, 0], sizes = [1, 32], strides = [1, 1]} : vector<1x128xf32> to vector<1x32xf32>
    %345 = vector.extract_strided_slice %316 {offsets = [0, 0], sizes = [1, 32], strides = [1, 1]} : vector<1x128xf32> to vector<1x32xf32>
    %346 = arith.addf %344, %345 : vector<1x32xf32>
    %347 = arith.negf %346 : vector<1x32xf32>
    %348 = math.exp %347 : vector<1x32xf32>
    %cst_96 = arith.constant 1.000000e+00 : f32
    %349 = vector.broadcast %cst_96 : f32 to vector<1x32xf32>
    %350 = arith.addf %349, %348 : vector<1x32xf32>
    %351 = arith.divf %349, %350 : vector<1x32xf32>
    %352 = vector.extract_strided_slice %343 {offsets = [0, 32], sizes = [1, 32], strides = [1, 1]} : vector<1x128xf32> to vector<1x32xf32>
    %353 = vector.extract_strided_slice %316 {offsets = [0, 32], sizes = [1, 32], strides = [1, 1]} : vector<1x128xf32> to vector<1x32xf32>
    %354 = arith.addf %352, %353 : vector<1x32xf32>
    %355 = arith.negf %354 : vector<1x32xf32>
    %356 = math.exp %355 : vector<1x32xf32>
    %cst_97 = arith.constant 1.000000e+00 : f32
    %357 = vector.broadcast %cst_97 : f32 to vector<1x32xf32>
    %358 = arith.addf %357, %356 : vector<1x32xf32>
    %359 = arith.divf %357, %358 : vector<1x32xf32>
    %360 = vector.extract_strided_slice %343 {offsets = [0, 64], sizes = [1, 32], strides = [1, 1]} : vector<1x128xf32> to vector<1x32xf32>
    %361 = vector.extract_strided_slice %316 {offsets = [0, 64], sizes = [1, 32], strides = [1, 1]} : vector<1x128xf32> to vector<1x32xf32>
    %362 = arith.mulf %351, %361 : vector<1x32xf32>
    %363 = arith.addf %360, %362 : vector<1x32xf32>
    %364 = math.tanh %363 : vector<1x32xf32>
    %cst_98 = arith.constant 1.000000e+00 : f32
    %365 = vector.broadcast %cst_98 : f32 to vector<1x32xf32>
    %366 = arith.subf %365, %359 : vector<1x32xf32>
    %367 = arith.mulf %366, %364 : vector<1x32xf32>
    %368 = arith.mulf %359, %311 : vector<1x32xf32>
    %369 = arith.addf %367, %368 : vector<1x32xf32>
    %370 = arith.index_cast %c5_i32 : i32 to index
    %c0_99 = arith.constant 0 : index
    %371 = vector.load %arg10[%370, %c0_99] : memref<8x32xf32, #tpu.memory_space<vmem>>, vector<1x32xf32>
    tpu.vector_store %arg10[%370, %c0_99], %369 {strides = array<i32>} : memref<8x32xf32, #tpu.memory_space<vmem>>, vector<1x32xf32>,
    %c6_i32 = arith.constant 6 : i32
    %372 = arith.truncf %369 : vector<1x32xf32> to vector<1x32xbf16>
    %cst_100 = arith.constant dense<0.000000e+00> : vector<1x128xf32>
    %373 = tpu.matmul %372, %0, %cst_100 {dimension_numbers = #tpu.dot_dimension_numbers<[1], [0], [0], [1], [0, 0, 1, 1], [], []>} : vector<1x32xbf16>, vector<32x128xbf16>, vector<1x128xf32> -> vector<1x128xf32>
    %374 = arith.addf %373, %2 : vector<1x128xf32>
    %375 = arith.index_cast %c6_i32 : i32 to index
    %c0_101 = arith.constant 0 : index
    %376 = vector.load %arg8[%375, %c0_101] : memref<8x128xf32, #tpu.memory_space<vmem>>, vector<1x128xf32>
    %377 = vector.extract_strided_slice %376 {offsets = [0, 0], sizes = [1, 8], strides = [1, 1]} : vector<1x128xf32> to vector<1x8xf32>
    %378 = vector.extract_strided_slice %374 {offsets = [0, 96], sizes = [1, 8], strides = [1, 1]} : vector<1x128xf32> to vector<1x8xf32>
    %379 = arith.addf %377, %378 : vector<1x8xf32>
    %cst_102 = arith.constant dense<0xFF800000> : vector<1xf32>
    %380 = vector.multi_reduction <maximumf>, %379, %cst_102 [1] : vector<1x8xf32> to vector<1xf32>
    %381 = vector.shape_cast %380 : vector<1xf32> to vector<1x1xf32>
    %382 = vector.broadcast %381 : vector<1x1xf32> to vector<1x8xf32>
    %383 = arith.subf %379, %382 : vector<1x8xf32>
    %384 = math.exp %383 : vector<1x8xf32>
    %cst_103 = arith.constant dense<0.000000e+00> : vector<1xf32>
    %385 = vector.multi_reduction <add>, %384, %cst_103 [1] : vector<1x8xf32> to vector<1xf32>
    %386 = vector.shape_cast %385 : vector<1xf32> to vector<1x1xf32>
    %387 = vector.broadcast %386 : vector<1x1xf32> to vector<1x8xf32>
    %388 = arith.divf %384, %387 : vector<1x8xf32>
    %389 = arith.index_cast %c6_i32 : i32 to index
    %c0_104 = arith.constant 0 : index
    %390 = vector.load %arg7[%389, %c0_104] : memref<8x8xf32, #tpu.memory_space<vmem>>, vector<1x8xf32>
    tpu.vector_store %arg7[%389, %c0_104], %388 {strides = array<i32>} : memref<8x8xf32, #tpu.memory_space<vmem>>, vector<1x8xf32>,
    %391 = arith.truncf %388 : vector<1x8xf32> to vector<1x8xbf16>
    %cst_105 = arith.constant dense<0.000000e+00> : vector<1x128xf32>
    %392 = tpu.matmul %391, %22, %cst_105 {dimension_numbers = #tpu.dot_dimension_numbers<[1], [0], [0], [1], [0, 0, 1, 1], [], []>} : vector<1x8xbf16>, vector<8x128xbf16>, vector<1x128xf32> -> vector<1x128xf32>
    %393 = arith.index_cast %c6_i32 : i32 to index
    %c0_106 = arith.constant 0 : index
    %394 = vector.load %arg9[%393, %c0_106] : memref<8x128xf32, #tpu.memory_space<vmem>>, vector<1x128xf32>
    %395 = arith.addf %394, %392 : vector<1x128xf32>
    %cst_107 = arith.constant 0.000000e+00 : f32
    %396 = vector.broadcast %cst_107 : f32 to vector<1x128xf32>
    %397 = arith.maximumf %395, %396 : vector<1x128xf32>
    %398 = vector.extract_strided_slice %397 {offsets = [0, 0], sizes = [1, 32], strides = [1, 1]} : vector<1x128xf32> to vector<1x32xf32>
    %399 = arith.truncf %398 : vector<1x32xf32> to vector<1x32xbf16>
    %cst_108 = arith.constant dense<0.000000e+00> : vector<1x128xf32>
    %400 = tpu.matmul %399, %1, %cst_108 {dimension_numbers = #tpu.dot_dimension_numbers<[1], [0], [0], [1], [0, 0, 1, 1], [], []>} : vector<1x32xbf16>, vector<32x128xbf16>, vector<1x128xf32> -> vector<1x128xf32>
    %401 = arith.addf %400, %3 : vector<1x128xf32>
    %402 = vector.extract_strided_slice %401 {offsets = [0, 0], sizes = [1, 32], strides = [1, 1]} : vector<1x128xf32> to vector<1x32xf32>
    %403 = vector.extract_strided_slice %374 {offsets = [0, 0], sizes = [1, 32], strides = [1, 1]} : vector<1x128xf32> to vector<1x32xf32>
    %404 = arith.addf %402, %403 : vector<1x32xf32>
    %405 = arith.negf %404 : vector<1x32xf32>
    %406 = math.exp %405 : vector<1x32xf32>
    %cst_109 = arith.constant 1.000000e+00 : f32
    %407 = vector.broadcast %cst_109 : f32 to vector<1x32xf32>
    %408 = arith.addf %407, %406 : vector<1x32xf32>
    %409 = arith.divf %407, %408 : vector<1x32xf32>
    %410 = vector.extract_strided_slice %401 {offsets = [0, 32], sizes = [1, 32], strides = [1, 1]} : vector<1x128xf32> to vector<1x32xf32>
    %411 = vector.extract_strided_slice %374 {offsets = [0, 32], sizes = [1, 32], strides = [1, 1]} : vector<1x128xf32> to vector<1x32xf32>
    %412 = arith.addf %410, %411 : vector<1x32xf32>
    %413 = arith.negf %412 : vector<1x32xf32>
    %414 = math.exp %413 : vector<1x32xf32>
    %cst_110 = arith.constant 1.000000e+00 : f32
    %415 = vector.broadcast %cst_110 : f32 to vector<1x32xf32>
    %416 = arith.addf %415, %414 : vector<1x32xf32>
    %417 = arith.divf %415, %416 : vector<1x32xf32>
    %418 = vector.extract_strided_slice %401 {offsets = [0, 64], sizes = [1, 32], strides = [1, 1]} : vector<1x128xf32> to vector<1x32xf32>
    %419 = vector.extract_strided_slice %374 {offsets = [0, 64], sizes = [1, 32], strides = [1, 1]} : vector<1x128xf32> to vector<1x32xf32>
    %420 = arith.mulf %409, %419 : vector<1x32xf32>
    %421 = arith.addf %418, %420 : vector<1x32xf32>
    %422 = math.tanh %421 : vector<1x32xf32>
    %cst_111 = arith.constant 1.000000e+00 : f32
    %423 = vector.broadcast %cst_111 : f32 to vector<1x32xf32>
    %424 = arith.subf %423, %417 : vector<1x32xf32>
    %425 = arith.mulf %424, %422 : vector<1x32xf32>
    %426 = arith.mulf %417, %369 : vector<1x32xf32>
    %427 = arith.addf %425, %426 : vector<1x32xf32>
    %428 = arith.index_cast %c6_i32 : i32 to index
    %c0_112 = arith.constant 0 : index
    %429 = vector.load %arg10[%428, %c0_112] : memref<8x32xf32, #tpu.memory_space<vmem>>, vector<1x32xf32>
    tpu.vector_store %arg10[%428, %c0_112], %427 {strides = array<i32>} : memref<8x32xf32, #tpu.memory_space<vmem>>, vector<1x32xf32>,
    %c7_i32 = arith.constant 7 : i32
    %430 = arith.truncf %427 : vector<1x32xf32> to vector<1x32xbf16>
    %cst_113 = arith.constant dense<0.000000e+00> : vector<1x128xf32>
    %431 = tpu.matmul %430, %0, %cst_113 {dimension_numbers = #tpu.dot_dimension_numbers<[1], [0], [0], [1], [0, 0, 1, 1], [], []>} : vector<1x32xbf16>, vector<32x128xbf16>, vector<1x128xf32> -> vector<1x128xf32>
    %432 = arith.addf %431, %2 : vector<1x128xf32>
    %433 = arith.index_cast %c7_i32 : i32 to index
    %c0_114 = arith.constant 0 : index
    %434 = vector.load %arg8[%433, %c0_114] : memref<8x128xf32, #tpu.memory_space<vmem>>, vector<1x128xf32>
    %435 = vector.extract_strided_slice %434 {offsets = [0, 0], sizes = [1, 8], strides = [1, 1]} : vector<1x128xf32> to vector<1x8xf32>
    %436 = vector.extract_strided_slice %432 {offsets = [0, 96], sizes = [1, 8], strides = [1, 1]} : vector<1x128xf32> to vector<1x8xf32>
    %437 = arith.addf %435, %436 : vector<1x8xf32>
    %cst_115 = arith.constant dense<0xFF800000> : vector<1xf32>
    %438 = vector.multi_reduction <maximumf>, %437, %cst_115 [1] : vector<1x8xf32> to vector<1xf32>
    %439 = vector.shape_cast %438 : vector<1xf32> to vector<1x1xf32>
    %440 = vector.broadcast %439 : vector<1x1xf32> to vector<1x8xf32>
    %441 = arith.subf %437, %440 : vector<1x8xf32>
    %442 = math.exp %441 : vector<1x8xf32>
    %cst_116 = arith.constant dense<0.000000e+00> : vector<1xf32>
    %443 = vector.multi_reduction <add>, %442, %cst_116 [1] : vector<1x8xf32> to vector<1xf32>
    %444 = vector.shape_cast %443 : vector<1xf32> to vector<1x1xf32>
    %445 = vector.broadcast %444 : vector<1x1xf32> to vector<1x8xf32>
    %446 = arith.divf %442, %445 : vector<1x8xf32>
    %447 = arith.index_cast %c7_i32 : i32 to index
    %c0_117 = arith.constant 0 : index
    %448 = vector.load %arg7[%447, %c0_117] : memref<8x8xf32, #tpu.memory_space<vmem>>, vector<1x8xf32>
    tpu.vector_store %arg7[%447, %c0_117], %446 {strides = array<i32>} : memref<8x8xf32, #tpu.memory_space<vmem>>, vector<1x8xf32>,
    %449 = arith.truncf %446 : vector<1x8xf32> to vector<1x8xbf16>
    %cst_118 = arith.constant dense<0.000000e+00> : vector<1x128xf32>
    %450 = tpu.matmul %449, %22, %cst_118 {dimension_numbers = #tpu.dot_dimension_numbers<[1], [0], [0], [1], [0, 0, 1, 1], [], []>} : vector<1x8xbf16>, vector<8x128xbf16>, vector<1x128xf32> -> vector<1x128xf32>
    %451 = arith.index_cast %c7_i32 : i32 to index
    %c0_119 = arith.constant 0 : index
    %452 = vector.load %arg9[%451, %c0_119] : memref<8x128xf32, #tpu.memory_space<vmem>>, vector<1x128xf32>
    %453 = arith.addf %452, %450 : vector<1x128xf32>
    %cst_120 = arith.constant 0.000000e+00 : f32
    %454 = vector.broadcast %cst_120 : f32 to vector<1x128xf32>
    %455 = arith.maximumf %453, %454 : vector<1x128xf32>
    %456 = vector.extract_strided_slice %455 {offsets = [0, 0], sizes = [1, 32], strides = [1, 1]} : vector<1x128xf32> to vector<1x32xf32>
    %457 = arith.truncf %456 : vector<1x32xf32> to vector<1x32xbf16>
    %cst_121 = arith.constant dense<0.000000e+00> : vector<1x128xf32>
    %458 = tpu.matmul %457, %1, %cst_121 {dimension_numbers = #tpu.dot_dimension_numbers<[1], [0], [0], [1], [0, 0, 1, 1], [], []>} : vector<1x32xbf16>, vector<32x128xbf16>, vector<1x128xf32> -> vector<1x128xf32>
    %459 = arith.addf %458, %3 : vector<1x128xf32>
    %460 = vector.extract_strided_slice %459 {offsets = [0, 0], sizes = [1, 32], strides = [1, 1]} : vector<1x128xf32> to vector<1x32xf32>
    %461 = vector.extract_strided_slice %432 {offsets = [0, 0], sizes = [1, 32], strides = [1, 1]} : vector<1x128xf32> to vector<1x32xf32>
    %462 = arith.addf %460, %461 : vector<1x32xf32>
    %463 = arith.negf %462 : vector<1x32xf32>
    %464 = math.exp %463 : vector<1x32xf32>
    %cst_122 = arith.constant 1.000000e+00 : f32
    %465 = vector.broadcast %cst_122 : f32 to vector<1x32xf32>
    %466 = arith.addf %465, %464 : vector<1x32xf32>
    %467 = arith.divf %465, %466 : vector<1x32xf32>
    %468 = vector.extract_strided_slice %459 {offsets = [0, 32], sizes = [1, 32], strides = [1, 1]} : vector<1x128xf32> to vector<1x32xf32>
    %469 = vector.extract_strided_slice %432 {offsets = [0, 32], sizes = [1, 32], strides = [1, 1]} : vector<1x128xf32> to vector<1x32xf32>
    %470 = arith.addf %468, %469 : vector<1x32xf32>
    %471 = arith.negf %470 : vector<1x32xf32>
    %472 = math.exp %471 : vector<1x32xf32>
    %cst_123 = arith.constant 1.000000e+00 : f32
    %473 = vector.broadcast %cst_123 : f32 to vector<1x32xf32>
    %474 = arith.addf %473, %472 : vector<1x32xf32>
    %475 = arith.divf %473, %474 : vector<1x32xf32>
    %476 = vector.extract_strided_slice %459 {offsets = [0, 64], sizes = [1, 32], strides = [1, 1]} : vector<1x128xf32> to vector<1x32xf32>
    %477 = vector.extract_strided_slice %432 {offsets = [0, 64], sizes = [1, 32], strides = [1, 1]} : vector<1x128xf32> to vector<1x32xf32>
    %478 = arith.mulf %467, %477 : vector<1x32xf32>
    %479 = arith.addf %476, %478 : vector<1x32xf32>
    %480 = math.tanh %479 : vector<1x32xf32>
    %cst_124 = arith.constant 1.000000e+00 : f32
    %481 = vector.broadcast %cst_124 : f32 to vector<1x32xf32>
    %482 = arith.subf %481, %475 : vector<1x32xf32>
    %483 = arith.mulf %482, %480 : vector<1x32xf32>
    %484 = arith.mulf %475, %427 : vector<1x32xf32>
    %485 = arith.addf %483, %484 : vector<1x32xf32>
    %486 = arith.index_cast %c7_i32 : i32 to index
    %c0_125 = arith.constant 0 : index
    %487 = vector.load %arg10[%486, %c0_125] : memref<8x32xf32, #tpu.memory_space<vmem>>, vector<1x32xf32>
    tpu.vector_store %arg10[%486, %c0_125], %485 {strides = array<i32>} : memref<8x32xf32, #tpu.memory_space<vmem>>, vector<1x32xf32>,
    %c8_i32 = arith.constant 8 : i32
    %c0_126 = arith.constant 0 : index
    %c0_127 = arith.constant 0 : index
    %488 = vector.load %arg6[%c0_126, %c0_127] : memref<1x32xf32, #tpu.memory_space<vmem>>, vector<1x32xf32>
    tpu.vector_store %arg6[%c0_126, %c0_127], %485 {strides = array<i32>} : memref<1x32xf32, #tpu.memory_space<vmem>>, vector<1x32xf32>,
    %c0_128 = arith.constant 0 : index
    %c0_129 = arith.constant 0 : index
    %489 = vector.load %arg10[%c0_128, %c0_129] : memref<8x32xf32, #tpu.memory_space<vmem>>, vector<8x32xf32>
    %490 = arith.truncf %489 : vector<8x32xf32> to vector<8x32xbf16>
    %c160 = arith.constant 160 : index
    %c0_130 = arith.constant 0 : index
    %491 = vector.load %arg3[%c160, %c0_130] : memref<192x128xbf16, #tpu.memory_space<vmem>>, vector<32x128xbf16>
    %cst_131 = arith.constant dense<0.000000e+00> : vector<8x128xf32>
    %492 = tpu.matmul %490, %491, %cst_131 {dimension_numbers = #tpu.dot_dimension_numbers<[1], [0], [0], [1], [0, 0, 1, 1], [], []>} : vector<8x32xbf16>, vector<32x128xbf16>, vector<8x128xf32> -> vector<8x128xf32>
    %c4 = arith.constant 4 : index
    %c0_132 = arith.constant 0 : index
    %493 = vector.load %arg4[%c4, %c0_132] : memref<8x128xf32, #tpu.memory_space<vmem>>, vector<1x128xf32>
    %494 = vector.broadcast %493 : vector<1x128xf32> to vector<8x128xf32>
    %495 = arith.addf %492, %494 : vector<8x128xf32>
    %cst_133 = arith.constant dense<0xFF800000> : vector<8xf32>
    %496 = vector.multi_reduction <maximumf>, %495, %cst_133 [1] : vector<8x128xf32> to vector<8xf32>
    %497 = vector.shape_cast %496 : vector<8xf32> to vector<8x1xf32>
    %498 = vector.broadcast %497 : vector<8x1xf32> to vector<8x128xf32>
    %499 = arith.subf %495, %498 : vector<8x128xf32>
    %500 = math.exp %499 : vector<8x128xf32>
    %cst_134 = arith.constant dense<0.000000e+00> : vector<8xf32>
    %501 = vector.multi_reduction <add>, %500, %cst_134 [1] : vector<8x128xf32> to vector<8xf32>
    %502 = vector.shape_cast %501 : vector<8xf32> to vector<8x1xf32>
    %503 = math.log %502 : vector<8x1xf32>
    %504 = vector.broadcast %503 : vector<8x1xf32> to vector<8x128xf32>
    %505 = arith.subf %499, %504 : vector<8x128xf32>
    %c0_135 = arith.constant 0 : index
    %c0_136 = arith.constant 0 : index
    %506 = vector.load %arg5[%c0_135, %c0_136] : memref<8x128xf32, #tpu.memory_space<vmem>>, vector<8x128xf32>
    tpu.vector_store %arg5[%c0_135, %c0_136], %505 {strides = array<i32>} : memref<8x128xf32, #tpu.memory_space<vmem>>, vector<8x128xf32>,
    return
  }
}

</mosaic_0001>

<llo_original>
// kernel: tpu_custom_call.1
$region0: #{tpu_custom_call.1}
  #allocation0 [shape = 'u32[]', space=smem, size = 0x4, offset = 0x4, fixed_abs, tag = 'smem constant byte address 0x4 - core index']
  #allocation1 [shape = 'u32[144,128]{1,0:T(1,128)}', space=vmem, size = 0x12000, scoped, tag = 'internal scratch']
  #allocation2 [shape = 'f32[8,128]{1,0:T(8,128)}', space=vmem, size = 0x1000, scoped, tag = 'scratch operand']
  #allocation3 [shape = 'f32[8,128]{1,0:T(8,128)}', space=vmem, size = 0x1000, scoped, tag = 'scratch operand']
  #allocation4 [shape = 'f32[8,32]{1,0:T(8,128)}', space=vmem, size = 0x1000, scoped, tag = 'scratch operand']
  %s0 = inlined_call_operand.hbm [shape: f32[8,32], index: 0, kind: input, shape index: {}]
  %s1 = inlined_call_operand.vmem [shape: f32[1,32], index: 1, kind: input, shape index: {}]
  %s2 = inlined_call_operand.hbm [shape: f32[8,32], index: 2, kind: input, shape index: {}]
  %s3 = inlined_call_operand.hbm [shape: bf16[192,128], index: 3, kind: input, shape index: {}]
  %s4 = inlined_call_operand.vmem [shape: f32[8,128], index: 4, kind: input, shape index: {}]
  %s5 = inlined_call_operand.hbm [shape: f32[8,128], index: 5, kind: output, shape index: {0}]
  %s6 = inlined_call_operand.hbm [shape: f32[1,32], index: 6, kind: output, shape index: {1}]
  %s7 = inlined_call_operand.hbm [shape: f32[8,8], index: 7, kind: output, shape index: {2}]
  %8 = xla_tuple %s5, %s6, %s7
  %s9 = sld [smem:[#allocation0]]
  $region58: #{tpu_custom_call.1} parent=0
    _
  %s11 = ssub.s32 1, %s9
  %s12 = scalar_select 0, %s11, %s9
  $region1: #{tpu_custom_call.1} parent=0
    #allocation5 [shape = 'u8[4096]{0}', space=vmem, size = 0x1000, scoped, tag = 'input window, operand 0, single buffered']
    #allocation6 [shape = 's32[1]{0}', space=sflag, size = 0x4, scoped, tag = 'scoped memory for tpu_custom_call.1']
    #allocation7 [shape = 's32[1]{0}', space=sflag, size = 0x4, scoped, tag = 'scoped memory for tpu_custom_call.1']
    #allocation8 [shape = 'u8[4096]{0}', space=vmem, size = 0x1000, scoped, tag = 'input window, operand 2, single buffered']
    #allocation9 [shape = 's32[1]{0}', space=sflag, size = 0x4, scoped, tag = 'scoped memory for tpu_custom_call.1']
    #allocation10 [shape = 'u8[49152]{0}', space=vmem, size = 0xc000, scoped, tag = 'input window, operand 3, single buffered']
    #allocation11 [shape = 'u8[4096]{0}', space=vmem, size = 0x1000, scoped, tag = 'output window, operand 0, single buffered']
    #allocation12 [shape = 'u8[512]{0}', space=vmem, size = 0x400, scoped, tag = 'output window, operand 1, single buffered']
    #allocation13 [shape = 's32[1]{0}', space=sflag, size = 0x4, scoped, tag = 'scoped memory for tpu_custom_call.1']
    #allocation14 [shape = 'u8[4096]{0}', space=vmem, size = 0x1000, scoped, tag = 'output window, operand 2, single buffered']
    %13 = vsyncpa [#allocation6], 0
    %14 = vsyncpa [#allocation9], 0
    %15 = vsyncpa [#allocation7], 0
    %16 = vsyncpa [#allocation13], 0
    // Predicated region
    $region2: #{tpu_custom_call.1} parent=1 // pred_check
      _
    $region3: #{tpu_custom_call.1} parent=1 // pred_check_branch
      %18 = sbr.rel (0) target = $region5
    $region4: #{tpu_custom_call.1} parent=1 // pred_region
      %s20 = ssub.s32 128, 128
      %21 = vsyncadd [#allocation6], %s20
      %s23 = sshll.u32 [#allocation5], 4
      %s24 = int_to_ptr.vmem [resolvable:$true] %s23
      %26 = dma.hbm_to_vmem [thread:$0]  %s0, 128, %s24, [#allocation6]
    $region5: #{tpu_custom_call.1} parent=1 // pred_fallthru
      _
    // Predicated region
    $region6: #{tpu_custom_call.1} parent=1 // pred_check
      _
    $region7: #{tpu_custom_call.1} parent=1 // pred_check_branch
      %28 = sbr.rel (0) target = $region9
    $region8: #{tpu_custom_call.1} parent=1 // pred_region
      _
    $region9: #{tpu_custom_call.1} parent=1 // pred_fallthru
      _
    // Predicated region
    $region10: #{tpu_custom_call.1} parent=1 // pred_check
      _
    $region11: #{tpu_custom_call.1} parent=1 // pred_check_branch
      %30 = sbr.rel (0) target = $region13
    $region12: #{tpu_custom_call.1} parent=1 // pred_region
      %s32 = ssub.s32 128, 128
      %33 = vsyncadd [#allocation9], %s32
      %s35 = sshll.u32 [#allocation8], 4
      %s36 = int_to_ptr.vmem [resolvable:$true] %s35
      %38 = dma.hbm_to_vmem [thread:$0]  %s2, 128, %s36, [#allocation9]
    $region13: #{tpu_custom_call.1} parent=1 // pred_fallthru
      _
    // Predicated region
    $region14: #{tpu_custom_call.1} parent=1 // pred_check
      _
    $region15: #{tpu_custom_call.1} parent=1 // pred_check_branch
      %40 = sbr.rel (0) target = $region17
    $region16: #{tpu_custom_call.1} parent=1 // pred_region
      %s42 = ssub.s32 1536, 1536
      %43 = vsyncadd [#allocation9], %s42
      %s44 = sshll.u32 [#allocation10], 4
      %s45 = int_to_ptr.vmem [resolvable:$true] %s44
      %50 = dma.hbm_to_vmem [thread:$0]  %s3, 1536, %s45, [#allocation9], 64, 64, 4
    $region17: #{tpu_custom_call.1} parent=1 // pred_fallthru
      _
    // Predicated region
    $region18: #{tpu_custom_call.1} parent=1 // pred_check
      _
    $region19: #{tpu_custom_call.1} parent=1 // pred_check_branch
      %52 = sbr.rel (0) target = $region21
    $region20: #{tpu_custom_call.1} parent=1 // pred_region
      _
    $region21: #{tpu_custom_call.1} parent=1 // pred_fallthru
      _
    // Predicated region
    $region22: #{tpu_custom_call.1} parent=1 // pred_check
      _
    $region23: #{tpu_custom_call.1} parent=1 // pred_check_branch
      %54 = sbr.rel (0) target = $region25
    $region24: #{tpu_custom_call.1} parent=1 // pred_region
      %55 = dma.done [#allocation6], 128
    $region25: #{tpu_custom_call.1} parent=1 // pred_fallthru
      _
    // Predicated region
    $region26: #{tpu_custom_call.1} parent=1 // pred_check
      _
    $region27: #{tpu_custom_call.1} parent=1 // pred_check_branch
      %57 = sbr.rel (0) target = $region29
    $region28: #{tpu_custom_call.1} parent=1 // pred_region
      %58 = dma.done [#allocation9], 128
    $region29: #{tpu_custom_call.1} parent=1 // pred_fallthru
      _
    // Predicated region
    $region30: #{tpu_custom_call.1} parent=1 // pred_check
      _
    $region31: #{tpu_custom_call.1} parent=1 // pred_check_branch
      %60 = sbr.rel (0) target = $region33
    $region32: #{tpu_custom_call.1} parent=1 // pred_region
      %61 = dma.done [#allocation9], 1536
    $region33: #{tpu_custom_call.1} parent=1 // pred_fallthru
      _
    %v63 = vld [vmem:[#allocation10 + $0x20] sm:$0xf]
    %v64 = vld [vmem:[#allocation10 + $0x24] sm:$0xf]
    %v65 = vld [vmem:[#allocation10 + $0x28] sm:$0xf]
    %v66 = vld [vmem:[#allocation10 + $0x2c] sm:$0xf]
    %v67 = vld [vmem:[#allocation10 + $0x30] sm:$0xf]
    %v68 = vld [vmem:[#allocation10 + $0x34] sm:$0xf]
    %v69 = vld [vmem:[#allocation10 + $0x38] sm:$0xf]
    %v70 = vld [vmem:[#allocation10 + $0x3c] sm:$0xf]
    %v71 = vld [vmem:[%s4 + $0x2] sm:$0x1]
    %v72 = vld [vmem:[%s4 + $0x3] sm:$0x1]
    %v73 = vld [vmem:[#allocation5] sm:$0xff]
    %v74 = vpack.c.bf16 %v73, %v73
    %v75 = vld [vmem:[#allocation10] sm:$0xf]
    %v76 = vld [vmem:[#allocation10 + $0x4] sm:$0xf]
    %v77 = vld [vmem:[#allocation10 + $0x8] sm:$0xf]
    %v78 = vld [vmem:[#allocation10 + $0xc] sm:$0xf]
    %v79 = vld [vmem:[%s4] sm:$0x1]
    %v80 = vlaneseq
    %v81 = vshrl.u32 %v80, 7
    %v82 = vsub.s32 0, %v81
    %v83 = vrot.slane %v79, %v82
    %v88 = vunpack.c.l.b16 %v75
    %v89 = vunpack.c.l.b16 %v76
    %v90 = vunpack.c.l.b16 %v77
    %v91 = vunpack.c.l.b16 %v78
    %v92 = vpack.c.b16 %v89, %v88
    %v93 = vpack.c.b16 %v91, %v90
    %vm96 = vcmask 261120
    %v98 = vsel %vm96, %v74, 0
    %100 = vmatprep.subr.bf16.mxu0 0
    %101 = vmatpush1.bf16.msra.mxu0 %v92
    %102 = vmatprep.subr.bf16.mxu0 0
    %103 = vmatpush1.bf16.msra.mxu0 %v93
    %104 = vmatprep.subr.bf16.mxu0 0
    %105 = vmatpush1.bf16.msra.mxu0 0
    %106 = vmatprep.subr.bf16.mxu0 0
    %107 = vmatpush1.bf16.msra.mxu0 0
    %108 = vmatprep.subr.bf16.mxu0 0
    %109 = vmatpush1.bf16.msra.mxu0 0
    %110 = vmatprep.subr.bf16.mxu0 0
    %111 = vmatpush1.bf16.msra.mxu0 0
    %112 = vmatprep.subr.bf16.mxu0 0
    %113 = vmatpush1.bf16.msra.mxu0 0
    %114 = vmatprep.subr.bf16.mxu0 0
    %115 = vmatpush1.bf16.msra.mxu0 0
    %116 = vmatprep.subr.bf16.mxu0 0
    %117 = vmatpush1.bf16.msra.mxu0 0
    %118 = vmatprep.subr.bf16.mxu0 0
    %119 = vmatpush1.bf16.msra.mxu0 0
    %120 = vmatprep.subr.bf16.mxu0 0
    %121 = vmatpush1.bf16.msra.mxu0 0
    %122 = vmatprep.subr.bf16.mxu0 0
    %123 = vmatpush1.bf16.msra.mxu0 0
    %124 = vmatprep.subr.bf16.mxu0 0
    %125 = vmatpush1.bf16.msra.mxu0 0
    %126 = vmatprep.subr.bf16.mxu0 0
    %127 = vmatpush1.bf16.msra.mxu0 0
    %128 = vmatprep.subr.bf16.mxu0 0
    %129 = vmatpush1.bf16.msra.mxu0 0
    %130 = vmatprep.subr.bf16.mxu0 0
    %131 = vmatpush1.bf16.msra.mxu0 0
    %132 = vmatprep.mubr.bf16.mxu0 0
    %133 = vmatmul.mubr.bf16.gmra.mrb[0].mxu0 %v98
    %v134 = vpop.f32.mrb[0].mxu0
    %v135 = vadd.f32 %v83, %v134
    %v136 = vpop.f32.mrb[0].mxu0
    %v137 = vpop.f32.mrb[0].mxu0
    %v138 = vpop.f32.mrb[0].mxu0
    %139 = vdwg.mxu0
    %140 = vst [vmem:[#allocation2] sm:$0xff] %v135
    %v141 = vld [vmem:[#allocation10 + $0x10] sm:$0xf]
    %v142 = vld [vmem:[#allocation10 + $0x14] sm:$0xf]
    %v143 = vld [vmem:[#allocation10 + $0x18] sm:$0xf]
    %v144 = vld [vmem:[#allocation10 + $0x1c] sm:$0xf]
    %v145 = vld [vmem:[%s4 + $0x1] sm:$0x1]
    %v146 = vlaneseq
    %v147 = vshrl.u32 %v146, 7
    %v148 = vsub.s32 0, %v147
    %v149 = vrot.slane %v145, %v148
    %v154 = vunpack.c.l.b16 %v141
    %v155 = vunpack.c.l.b16 %v142
    %v156 = vunpack.c.l.b16 %v143
    %v157 = vunpack.c.l.b16 %v144
    %v158 = vpack.c.b16 %v155, %v154
    %v159 = vpack.c.b16 %v157, %v156
    %162 = vmatprep.subr.bf16.mxu0 0
    %163 = vmatpush1.bf16.msra.mxu0 %v158
    %164 = vmatprep.subr.bf16.mxu0 0
    %165 = vmatpush1.bf16.msra.mxu0 %v159
    %166 = vmatprep.subr.bf16.mxu0 0
    %167 = vmatpush1.bf16.msra.mxu0 0
    %168 = vmatprep.subr.bf16.mxu0 0
    %169 = vmatpush1.bf16.msra.mxu0 0
    %170 = vmatprep.subr.bf16.mxu0 0
    %171 = vmatpush1.bf16.msra.mxu0 0
    %172 = vmatprep.subr.bf16.mxu0 0
    %173 = vmatpush1.bf16.msra.mxu0 0
    %174 = vmatprep.subr.bf16.mxu0 0
    %175 = vmatpush1.bf16.msra.mxu0 0
    %176 = vmatprep.subr.bf16.mxu0 0
    %177 = vmatpush1.bf16.msra.mxu0 0
    %178 = vmatprep.subr.bf16.mxu0 0
    %179 = vmatpush1.bf16.msra.mxu0 0
    %180 = vmatprep.subr.bf16.mxu0 0
    %181 = vmatpush1.bf16.msra.mxu0 0
    %182 = vmatprep.subr.bf16.mxu0 0
    %183 = vmatpush1.bf16.msra.mxu0 0
    %184 = vmatprep.subr.bf16.mxu0 0
    %185 = vmatpush1.bf16.msra.mxu0 0
    %186 = vmatprep.subr.bf16.mxu0 0
    %187 = vmatpush1.bf16.msra.mxu0 0
    %188 = vmatprep.subr.bf16.mxu0 0
    %189 = vmatpush1.bf16.msra.mxu0 0
    %190 = vmatprep.subr.bf16.mxu0 0
    %191 = vmatpush1.bf16.msra.mxu0 0
    %192 = vmatprep.subr.bf16.mxu0 0
    %193 = vmatpush1.bf16.msra.mxu0 0
    %194 = vmatprep.mubr.bf16.mxu0 0
    %195 = vmatmul.mubr.bf16.gmra.mrb[0].mxu0 %v98
    %v196 = vpop.f32.mrb[0].mxu0
    %v197 = vadd.f32 %v149, %v196
    %v198 = vpop.f32.mrb[0].mxu0
    %v199 = vpop.f32.mrb[0].mxu0
    %v200 = vpop.f32.mrb[0].mxu0
    %201 = vdwg.mxu0
    %202 = vst [vmem:[#allocation3] sm:$0xff] %v197
    %v203 = vld [vmem:[#allocation8] sm:$0xff]
    %v204 = vpack.c.bf16 %v203, %v203
    %v205 = vld [vmem:[#allocation10 + $0x40] sm:$0xf]
    %v206 = vld [vmem:[#allocation10 + $0x44] sm:$0xf]
    %v207 = vld [vmem:[#allocation10 + $0x48] sm:$0xf]
    %v208 = vld [vmem:[#allocation10 + $0x4c] sm:$0xf]
    %v213 = vunpack.c.l.b16 %v205
    %v214 = vunpack.c.l.b16 %v206
    %v215 = vunpack.c.l.b16 %v207
    %v216 = vunpack.c.l.b16 %v208
    %v217 = vpack.c.b16 %v214, %v213
    %v218 = vpack.c.b16 %v216, %v215
    %v222 = vsel %vm96, %v204, 0
    %224 = vmatprep.subr.bf16.mxu0 0
    %225 = vmatpush1.bf16.msra.mxu0 %v217
    %226 = vmatprep.subr.bf16.mxu0 0
    %227 = vmatpush1.bf16.msra.mxu0 %v218
    %228 = vmatprep.subr.bf16.mxu0 0
    %229 = vmatpush1.bf16.msra.mxu0 0
    %230 = vmatprep.subr.bf16.mxu0 0
    %231 = vmatpush1.bf16.msra.mxu0 0
    %232 = vmatprep.subr.bf16.mxu0 0
    %233 = vmatpush1.bf16.msra.mxu0 0
    %234 = vmatprep.subr.bf16.mxu0 0
    %235 = vmatpush1.bf16.msra.mxu0 0
    %236 = vmatprep.subr.bf16.mxu0 0
    %237 = vmatpush1.bf16.msra.mxu0 0
    %238 = vmatprep.subr.bf16.mxu0 0
    %239 = vmatpush1.bf16.msra.mxu0 0
    %240 = vmatprep.subr.bf16.mxu0 0
    %241 = vmatpush1.bf16.msra.mxu0 0
    %242 = vmatprep.subr.bf16.mxu0 0
    %243 = vmatpush1.bf16.msra.mxu0 0
    %244 = vmatprep.subr.bf16.mxu0 0
    %245 = vmatpush1.bf16.msra.mxu0 0
    %246 = vmatprep.subr.bf16.mxu0 0
    %247 = vmatpush1.bf16.msra.mxu0 0
    %248 = vmatprep.subr.bf16.mxu0 0
    %249 = vmatpush1.bf16.msra.mxu0 0
    %250 = vmatprep.subr.bf16.mxu0 0
    %251 = vmatpush1.bf16.msra.mxu0 0
    %252 = vmatprep.subr.bf16.mxu0 0
    %253 = vmatpush1.bf16.msra.mxu0 0
    %254 = vmatprep.subr.bf16.mxu0 0
    %255 = vmatpush1.bf16.msra.mxu0 0
    %256 = vmatprep.mubr.bf16.mxu0 0
    %257 = vmatmul.mubr.bf16.gmra.mrb[0].mxu0 %v222
    %v258 = vpop.f32.mrb[0].mxu0
    %v259 = vadd.f32 0.0, %v258
    %v260 = vpop.f32.mrb[0].mxu0
    %v261 = vpop.f32.mrb[0].mxu0
    %v262 = vpop.f32.mrb[0].mxu0
    %263 = vdwg.mxu0
    %v264 = vpack.c.bf16 %v259, %v259
    %v265 = vld [vmem:[%s1] sm:$0x1]
    %v266 = vpack.c.bf16 %v265, %v265
    %v271 = vunpack.c.l.b16 %v63
    %v272 = vunpack.c.l.b16 %v64
    %v273 = vunpack.c.l.b16 %v65
    %v274 = vunpack.c.l.b16 %v66
    %v275 = vpack.c.b16 %v272, %v271
    %v276 = vpack.c.b16 %v274, %v273
    %v280 = vsel %vm96, %v266, 0
    %282 = vmatprep.subr.bf16.mxu0 0
    %283 = vmatpush1.bf16.msra.mxu0 %v275
    %284 = vmatprep.subr.bf16.mxu0 0
    %285 = vmatpush1.bf16.msra.mxu0 %v276
    %286 = vmatprep.subr.bf16.mxu0 0
    %287 = vmatpush1.bf16.msra.mxu0 0
    %288 = vmatprep.subr.bf16.mxu0 0
    %289 = vmatpush1.bf16.msra.mxu0 0
    %290 = vmatprep.subr.bf16.mxu0 0
    %291 = vmatpush1.bf16.msra.mxu0 0
    %292 = vmatprep.subr.bf16.mxu0 0
    %293 = vmatpush1.bf16.msra.mxu0 0
    %294 = vmatprep.subr.bf16.mxu0 0
    %295 = vmatpush1.bf16.msra.mxu0 0
    %296 = vmatprep.subr.bf16.mxu0 0
    %297 = vmatpush1.bf16.msra.mxu0 0
    %298 = vmatprep.subr.bf16.mxu0 0
    %299 = vmatpush1.bf16.msra.mxu0 0
    %300 = vmatprep.subr.bf16.mxu0 0
    %301 = vmatpush1.bf16.msra.mxu0 0
    %302 = vmatprep.subr.bf16.mxu0 0
    %303 = vmatpush1.bf16.msra.mxu0 0
    %304 = vmatprep.subr.bf16.mxu0 0
    %305 = vmatpush1.bf16.msra.mxu0 0
    %306 = vmatprep.subr.bf16.mxu0 0
    %307 = vmatpush1.bf16.msra.mxu0 0
    %308 = vmatprep.subr.bf16.mxu0 0
    %309 = vmatpush1.bf16.msra.mxu0 0
    %310 = vmatprep.subr.bf16.mxu0 0
    %311 = vmatpush1.bf16.msra.mxu0 0
    %312 = vmatprep.subr.bf16.mxu0 0
    %313 = vmatpush1.bf16.msra.mxu0 0
    %314 = vmatprep.mubr.bf16.mxu0 0
    %315 = vmatmul.mubr.bf16.gmra.mrb[0].mxu0 %v280
    %v316 = vpop.f32.mrb[0].mxu0
    %v317 = vadd.f32 %v71, %v316
    %v318 = vpop.f32.mrb[0].mxu0
    %v319 = vpop.f32.mrb[0].mxu0
    %v320 = vpop.f32.mrb[0].mxu0
    %321 = vdwg.mxu0
    %v322 = vld [vmem:[#allocation2] sm:$0x1]
    %324 = vrot.lane.b32.xlu0 %v317, 32
    %v325 = vpop.permute.xlu0 %324
    %v327 = vadd.f32 %v322, %v325
    %vm328 = vcmask 57344
    %v329 = vsel %vm328, %v327, -inf
    %330 = vmax.xlane.f32.xlu0 %v329
    %v331 = vpop.xlane.xlu0 %330
    %v332 = vsub.f32 %v327, %v331
    %v333 = vmul.f32 %v332, 1.442695
    %v334 = vpow.pop %v333
    %v335 = vsel %vm328, %v334, 0.0
    %336 = vadd.xlane.f32.xlu0 %v335
    %v337 = vpop.xlane.xlu0 %336
    %v338 = vrcp.pop %v337
    %v339 = vmul.f32 %v334, %v338
    %340 = vst.msk [vmem:[#allocation14] sm:$0x1] %vm328, %v339
    %v341 = vpack.c.bf16 %v339, %v339
    %vm342 = vcmask 64512
    %v344 = vsel %vm342, %v341, 0
    %vm346 = vcmask 1043456
    %v348 = vsel %vm346, %v264, 0
    %350 = vmatprep.subr.bf16.mxu0 0
    %351 = vmatpush1.bf16.msra.mxu0 %v348
    %352 = vmatprep.subr.bf16.mxu0 0
    %353 = vmatpush1.bf16.msra.mxu0 0
    %354 = vmatprep.subr.bf16.mxu0 0
    %355 = vmatpush1.bf16.msra.mxu0 0
    %356 = vmatprep.subr.bf16.mxu0 0
    %357 = vmatpush1.bf16.msra.mxu0 0
    %358 = vmatprep.subr.bf16.mxu0 0
    %359 = vmatpush1.bf16.msra.mxu0 0
    %360 = vmatprep.subr.bf16.mxu0 0
    %361 = vmatpush1.bf16.msra.mxu0 0
    %362 = vmatprep.subr.bf16.mxu0 0
    %363 = vmatpush1.bf16.msra.mxu0 0
    %364 = vmatprep.subr.bf16.mxu0 0
    %365 = vmatpush1.bf16.msra.mxu0 0
    %366 = vmatprep.subr.bf16.mxu0 0
    %367 = vmatpush1.bf16.msra.mxu0 0
    %368 = vmatprep.subr.bf16.mxu0 0
    %369 = vmatpush1.bf16.msra.mxu0 0
    %370 = vmatprep.subr.bf16.mxu0 0
    %371 = vmatpush1.bf16.msra.mxu0 0
    %372 = vmatprep.subr.bf16.mxu0 0
    %373 = vmatpush1.bf16.msra.mxu0 0
    %374 = vmatprep.subr.bf16.mxu0 0
    %375 = vmatpush1.bf16.msra.mxu0 0
    %376 = vmatprep.subr.bf16.mxu0 0
    %377 = vmatpush1.bf16.msra.mxu0 0
    %378 = vmatprep.subr.bf16.mxu0 0
    %379 = vmatpush1.bf16.msra.mxu0 0
    %380 = vmatprep.subr.bf16.mxu0 0
    %381 = vmatpush1.bf16.msra.mxu0 0
    %382 = vmatprep.mubr.bf16.mxu0 0
    %383 = vmatmul.mubr.bf16.gmra.mrb[0].mxu0 %v344
    %v384 = vpop.f32.mrb[0].mxu0
    %v385 = vadd.f32 0.0, %v384
    %v386 = vpop.f32.mrb[0].mxu0
    %v387 = vpop.f32.mrb[0].mxu0
    %v388 = vpop.f32.mrb[0].mxu0
    %389 = vdwg.mxu0
    %v390 = vld [vmem:[#allocation3] sm:$0x1]
    %v391 = vadd.f32 %v390, %v385
    %v392 = vmax.f32 %v391, 0.0
    %v393 = vpack.c.bf16 %v392, %v392
    %v398 = vunpack.c.l.b16 %v67
    %v399 = vunpack.c.l.b16 %v68
    %v400 = vunpack.c.l.b16 %v69
    %v401 = vunpack.c.l.b16 %v70
    %v402 = vpack.c.b16 %v399, %v398
    %v403 = vpack.c.b16 %v401, %v400
    %v407 = vsel %vm96, %v393, 0
    %409 = vmatprep.subr.bf16.mxu0 0
    %410 = vmatpush1.bf16.msra.mxu0 %v402
    %411 = vmatprep.subr.bf16.mxu0 0
    %412 = vmatpush1.bf16.msra.mxu0 %v403
    %413 = vmatprep.subr.bf16.mxu0 0
    %414 = vmatpush1.bf16.msra.mxu0 0
    %415 = vmatprep.subr.bf16.mxu0 0
    %416 = vmatpush1.bf16.msra.mxu0 0
    %417 = vmatprep.subr.bf16.mxu0 0
    %418 = vmatpush1.bf16.msra.mxu0 0
    %419 = vmatprep.subr.bf16.mxu0 0
    %420 = vmatpush1.bf16.msra.mxu0 0
    %421 = vmatprep.subr.bf16.mxu0 0
    %422 = vmatpush1.bf16.msra.mxu0 0
    %423 = vmatprep.subr.bf16.mxu0 0
    %424 = vmatpush1.bf16.msra.mxu0 0
    %425 = vmatprep.subr.bf16.mxu0 0
    %426 = vmatpush1.bf16.msra.mxu0 0
    %427 = vmatprep.subr.bf16.mxu0 0
    %428 = vmatpush1.bf16.msra.mxu0 0
    %429 = vmatprep.subr.bf16.mxu0 0
    %430 = vmatpush1.bf16.msra.mxu0 0
    %431 = vmatprep.subr.bf16.mxu0 0
    %432 = vmatpush1.bf16.msra.mxu0 0
    %433 = vmatprep.subr.bf16.mxu0 0
    %434 = vmatpush1.bf16.msra.mxu0 0
    %435 = vmatprep.subr.bf16.mxu0 0
    %436 = vmatpush1.bf16.msra.mxu0 0
    %437 = vmatprep.subr.bf16.mxu0 0
    %438 = vmatpush1.bf16.msra.mxu0 0
    %439 = vmatprep.subr.bf16.mxu0 0
    %440 = vmatpush1.bf16.msra.mxu0 0
    %441 = vmatprep.mubr.bf16.mxu0 0
    %442 = vmatmul.mubr.bf16.gmra.mrb[0].mxu0 %v407
    %v443 = vpop.f32.mrb[0].mxu0
    %v444 = vadd.f32 %v72, %v443
    %v445 = vpop.f32.mrb[0].mxu0
    %v446 = vpop.f32.mrb[0].mxu0
    %v447 = vpop.f32.mrb[0].mxu0
    %448 = vdwg.mxu0
    %v449 = vadd.f32 %v444, %v317
    %v450 = vxor.u32 %v449, 2147483648
    %v451 = vmul.f32 %v450, 1.442695
    %v452 = vpow.pop %v451
    %v453 = vadd.f32 %v452, 1.0
    %v454 = vrcp.pop %v453
    %v455 = vmul.f32 1.0, %v454
    %456 = vrot.lane.b32.xlu0 %v317, 64
    %v457 = vpop.permute.xlu0 %456
    %v459 = vmul.f32 %v455, %v457
    %461 = vrot.lane.b32.xlu0 %v459, 64
    %v462 = vpop.permute.xlu0 %461
    %v464 = vadd.f32 %v444, %v462
    %v465 = vtanh.pop %v464
    %v466 = vsub.f32 1.0, %v455
    %468 = vrot.lane.b32.xlu0 %v465, 96
    %v469 = vpop.permute.xlu0 %468
    %v471 = vmul.f32 %v466, %v469
    %v473 = vlaneseq
    %v474 = vshrl.u32 %v473, 7
    %v475 = vsub.s32 0, %v474
    %v476 = vrot.slane %v265, %v475
    %477 = vrot.lane.b32.xlu0 %v476, 32
    %v478 = vpop.permute.xlu0 %477
    %v480 = vmul.f32 %v455, %v478
    %v481 = vadd.f32 %v471, %v480
    %483 = vrot.lane.b32.xlu0 %v481, 96
    %v484 = vpop.permute.xlu0 %483
    %vm486 = vcmask 253952
    %487 = vst.msk [vmem:[#allocation4] sm:$0x1] %vm486, %v484
    %v488 = vpack.c.bf16 %v481, %v481
    %490 = vrot.lane.b32.xlu0 %v488, 96
    %v491 = vpop.permute.xlu0 %490
    %v493 = vsel %vm96, %v491, 0
    %495 = vmatprep.subr.bf16.mxu0 0
    %496 = vmatpush1.bf16.msra.mxu0 %v275
    %497 = vmatprep.subr.bf16.mxu0 0
    %498 = vmatpush1.bf16.msra.mxu0 %v276
    %499 = vmatprep.subr.bf16.mxu0 0
    %500 = vmatpush1.bf16.msra.mxu0 0
    %501 = vmatprep.subr.bf16.mxu0 0
    %502 = vmatpush1.bf16.msra.mxu0 0
    %503 = vmatprep.subr.bf16.mxu0 0
    %504 = vmatpush1.bf16.msra.mxu0 0
    %505 = vmatprep.subr.bf16.mxu0 0
    %506 = vmatpush1.bf16.msra.mxu0 0
    %507 = vmatprep.subr.bf16.mxu0 0
    %508 = vmatpush1.bf16.msra.mxu0 0
    %509 = vmatprep.subr.bf16.mxu0 0
    %510 = vmatpush1.bf16.msra.mxu0 0
    %511 = vmatprep.subr.bf16.mxu0 0
    %512 = vmatpush1.bf16.msra.mxu0 0
    %513 = vmatprep.subr.bf16.mxu0 0
    %514 = vmatpush1.bf16.msra.mxu0 0
    %515 = vmatprep.subr.bf16.mxu0 0
    %516 = vmatpush1.bf16.msra.mxu0 0
    %517 = vmatprep.subr.bf16.mxu0 0
    %518 = vmatpush1.bf16.msra.mxu0 0
    %519 = vmatprep.subr.bf16.mxu0 0
    %520 = vmatpush1.bf16.msra.mxu0 0
    %521 = vmatprep.subr.bf16.mxu0 0
    %522 = vmatpush1.bf16.msra.mxu0 0
    %523 = vmatprep.subr.bf16.mxu0 0
    %524 = vmatpush1.bf16.msra.mxu0 0
    %525 = vmatprep.subr.bf16.mxu0 0
    %526 = vmatpush1.bf16.msra.mxu0 0
    %527 = vmatprep.mubr.bf16.mxu0 0
    %528 = vmatmul.mubr.bf16.gmra.mrb[0].mxu0 %v493
    %v529 = vpop.f32.mrb[0].mxu0
    %v530 = vadd.f32 %v71, %v529
    %v531 = vpop.f32.mrb[0].mxu0
    %v532 = vpop.f32.mrb[0].mxu0
    %v533 = vpop.f32.mrb[0].mxu0
    %534 = vdwg.mxu0
    %v535 = vld [vmem:[#allocation2 + $0x1] sm:$0x1]
    %537 = vrot.lane.b32.xlu0 %v530, 32
    %v538 = vpop.permute.xlu0 %537
    %v540 = vadd.f32 %v535, %v538
    %v541 = vsel %vm328, %v540, -inf
    %542 = vmax.xlane.f32.xlu0 %v541
    %v543 = vpop.xlane.xlu0 %542
    %v544 = vsub.f32 %v540, %v543
    %v545 = vmul.f32 %v544, 1.442695
    %v546 = vpow.pop %v545
    %v547 = vsel %vm328, %v546, 0.0
    %548 = vadd.xlane.f32.xlu0 %v547
    %v549 = vpop.xlane.xlu0 %548
    %v550 = vrcp.pop %v549
    %v551 = vmul.f32 %v546, %v550
    %552 = vst.msk [vmem:[#allocation14 + $0x1] sm:$0x1] %vm328, %v551
    %v553 = vpack.c.bf16 %v551, %v551
    %v555 = vsel %vm342, %v553, 0
    %557 = vmatprep.subr.bf16.mxu0 0
    %558 = vmatpush1.bf16.msra.mxu0 %v348
    %559 = vmatprep.subr.bf16.mxu0 0
    %560 = vmatpush1.bf16.msra.mxu0 0
    %561 = vmatprep.subr.bf16.mxu0 0
    %562 = vmatpush1.bf16.msra.mxu0 0
    %563 = vmatprep.subr.bf16.mxu0 0
    %564 = vmatpush1.bf16.msra.mxu0 0
    %565 = vmatprep.subr.bf16.mxu0 0
    %566 = vmatpush1.bf16.msra.mxu0 0
    %567 = vmatprep.subr.bf16.mxu0 0
    %568 = vmatpush1.bf16.msra.mxu0 0
    %569 = vmatprep.subr.bf16.mxu0 0
    %570 = vmatpush1.bf16.msra.mxu0 0
    %571 = vmatprep.subr.bf16.mxu0 0
    %572 = vmatpush1.bf16.msra.mxu0 0
    %573 = vmatprep.subr.bf16.mxu0 0
    %574 = vmatpush1.bf16.msra.mxu0 0
    %575 = vmatprep.subr.bf16.mxu0 0
    %576 = vmatpush1.bf16.msra.mxu0 0
    %577 = vmatprep.subr.bf16.mxu0 0
    %578 = vmatpush1.bf16.msra.mxu0 0
    %579 = vmatprep.subr.bf16.mxu0 0
    %580 = vmatpush1.bf16.msra.mxu0 0
    %581 = vmatprep.subr.bf16.mxu0 0
    %582 = vmatpush1.bf16.msra.mxu0 0
    %583 = vmatprep.subr.bf16.mxu0 0
    %584 = vmatpush1.bf16.msra.mxu0 0
    %585 = vmatprep.subr.bf16.mxu0 0
    %586 = vmatpush1.bf16.msra.mxu0 0
    %587 = vmatprep.subr.bf16.mxu0 0
    %588 = vmatpush1.bf16.msra.mxu0 0
    %589 = vmatprep.mubr.bf16.mxu0 0
    %590 = vmatmul.mubr.bf16.gmra.mrb[0].mxu0 %v555
    %v591 = vpop.f32.mrb[0].mxu0
    %v592 = vadd.f32 0.0, %v591
    %v593 = vpop.f32.mrb[0].mxu0
    %v594 = vpop.f32.mrb[0].mxu0
    %v595 = vpop.f32.mrb[0].mxu0
    %596 = vdwg.mxu0
    %v597 = vld [vmem:[#allocation3 + $0x1] sm:$0x1]
    %v598 = vadd.f32 %v597, %v592
    %v599 = vmax.f32 %v598, 0.0
    %v600 = vpack.c.bf16 %v599, %v599
    %v602 = vsel %vm96, %v600, 0
    %604 = vmatprep.subr.bf16.mxu0 0
    %605 = vmatpush1.bf16.msra.mxu0 %v402
    %606 = vmatprep.subr.bf16.mxu0 0
    %607 = vmatpush1.bf16.msra.mxu0 %v403
    %608 = vmatprep.subr.bf16.mxu0 0
    %609 = vmatpush1.bf16.msra.mxu0 0
    %610 = vmatprep.subr.bf16.mxu0 0
    %611 = vmatpush1.bf16.msra.mxu0 0
    %612 = vmatprep.subr.bf16.mxu0 0
    %613 = vmatpush1.bf16.msra.mxu0 0
    %614 = vmatprep.subr.bf16.mxu0 0
    %615 = vmatpush1.bf16.msra.mxu0 0
    %616 = vmatprep.subr.bf16.mxu0 0
    %617 = vmatpush1.bf16.msra.mxu0 0
    %618 = vmatprep.subr.bf16.mxu0 0
    %619 = vmatpush1.bf16.msra.mxu0 0
    %620 = vmatprep.subr.bf16.mxu0 0
    %621 = vmatpush1.bf16.msra.mxu0 0
    %622 = vmatprep.subr.bf16.mxu0 0
    %623 = vmatpush1.bf16.msra.mxu0 0
    %624 = vmatprep.subr.bf16.mxu0 0
    %625 = vmatpush1.bf16.msra.mxu0 0
    %626 = vmatprep.subr.bf16.mxu0 0
    %627 = vmatpush1.bf16.msra.mxu0 0
    %628 = vmatprep.subr.bf16.mxu0 0
    %629 = vmatpush1.bf16.msra.mxu0 0
    %630 = vmatprep.subr.bf16.mxu0 0
    %631 = vmatpush1.bf16.msra.mxu0 0
    %632 = vmatprep.subr.bf16.mxu0 0
    %633 = vmatpush1.bf16.msra.mxu0 0
    %634 = vmatprep.subr.bf16.mxu0 0
    %635 = vmatpush1.bf16.msra.mxu0 0
    %636 = vmatprep.mubr.bf16.mxu0 0
    %637 = vmatmul.mubr.bf16.gmra.mrb[0].mxu0 %v602
    %v638 = vpop.f32.mrb[0].mxu0
    %v639 = vadd.f32 %v72, %v638
    %v640 = vpop.f32.mrb[0].mxu0
    %v641 = vpop.f32.mrb[0].mxu0
    %v642 = vpop.f32.mrb[0].mxu0
    %643 = vdwg.mxu0
    %v644 = vadd.f32 %v639, %v530
    %v645 = vxor.u32 %v644, 2147483648
    %v646 = vmul.f32 %v645, 1.442695
    %v647 = vpow.pop %v646
    %v648 = vadd.f32 %v647, 1.0
    %v649 = vrcp.pop %v648
    %v650 = vmul.f32 1.0, %v649
    %651 = vrot.lane.b32.xlu0 %v530, 64
    %v652 = vpop.permute.xlu0 %651
    %v654 = vmul.f32 %v650, %v652
    %656 = vrot.lane.b32.xlu0 %v654, 64
    %v657 = vpop.permute.xlu0 %656
    %v659 = vadd.f32 %v639, %v657
    %v660 = vtanh.pop %v659
    %v661 = vsub.f32 1.0, %v650
    %663 = vrot.lane.b32.xlu0 %v660, 96
    %v664 = vpop.permute.xlu0 %663
    %v666 = vmul.f32 %v661, %v664
    %v667 = vmul.f32 %v650, %v481
    %v668 = vadd.f32 %v666, %v667
    %670 = vrot.lane.b32.xlu0 %v668, 96
    %v671 = vpop.permute.xlu0 %670
    %673 = vst.msk [vmem:[#allocation4 + $0x1] sm:$0x1] %vm486, %v671
    %v674 = vpack.c.bf16 %v668, %v668
    %676 = vrot.lane.b32.xlu0 %v674, 96
    %v677 = vpop.permute.xlu0 %676
    %v679 = vsel %vm96, %v677, 0
    %681 = vmatprep.subr.bf16.mxu0 0
    %682 = vmatpush1.bf16.msra.mxu0 %v275
    %683 = vmatprep.subr.bf16.mxu0 0
    %684 = vmatpush1.bf16.msra.mxu0 %v276
    %685 = vmatprep.subr.bf16.mxu0 0
    %686 = vmatpush1.bf16.msra.mxu0 0
    %687 = vmatprep.subr.bf16.mxu0 0
    %688 = vmatpush1.bf16.msra.mxu0 0
    %689 = vmatprep.subr.bf16.mxu0 0
    %690 = vmatpush1.bf16.msra.mxu0 0
    %691 = vmatprep.subr.bf16.mxu0 0
    %692 = vmatpush1.bf16.msra.mxu0 0
    %693 = vmatprep.subr.bf16.mxu0 0
    %694 = vmatpush1.bf16.msra.mxu0 0
    %695 = vmatprep.subr.bf16.mxu0 0
    %696 = vmatpush1.bf16.msra.mxu0 0
    %697 = vmatprep.subr.bf16.mxu0 0
    %698 = vmatpush1.bf16.msra.mxu0 0
    %699 = vmatprep.subr.bf16.mxu0 0
    %700 = vmatpush1.bf16.msra.mxu0 0
    %701 = vmatprep.subr.bf16.mxu0 0
    %702 = vmatpush1.bf16.msra.mxu0 0
    %703 = vmatprep.subr.bf16.mxu0 0
    %704 = vmatpush1.bf16.msra.mxu0 0
    %705 = vmatprep.subr.bf16.mxu0 0
    %706 = vmatpush1.bf16.msra.mxu0 0
    %707 = vmatprep.subr.bf16.mxu0 0
    %708 = vmatpush1.bf16.msra.mxu0 0
    %709 = vmatprep.subr.bf16.mxu0 0
    %710 = vmatpush1.bf16.msra.mxu0 0
    %711 = vmatprep.subr.bf16.mxu0 0
    %712 = vmatpush1.bf16.msra.mxu0 0
    %713 = vmatprep.mubr.bf16.mxu0 0
    %714 = vmatmul.mubr.bf16.gmra.mrb[0].mxu0 %v679
    %v715 = vpop.f32.mrb[0].mxu0
    %v716 = vadd.f32 %v71, %v715
    %v717 = vpop.f32.mrb[0].mxu0
    %v718 = vpop.f32.mrb[0].mxu0
    %v719 = vpop.f32.mrb[0].mxu0
    %720 = vdwg.mxu0
    %v721 = vld [vmem:[#allocation2 + $0x2] sm:$0x1]
    %723 = vrot.lane.b32.xlu0 %v716, 32
    %v724 = vpop.permute.xlu0 %723
    %v726 = vadd.f32 %v721, %v724
    %v727 = vsel %vm328, %v726, -inf
    %728 = vmax.xlane.f32.xlu0 %v727
    %v729 = vpop.xlane.xlu0 %728
    %v730 = vsub.f32 %v726, %v729
    %v731 = vmul.f32 %v730, 1.442695
    %v732 = vpow.pop %v731
    %v733 = vsel %vm328, %v732, 0.0
    %734 = vadd.xlane.f32.xlu0 %v733
    %v735 = vpop.xlane.xlu0 %734
    %v736 = vrcp.pop %v735
    %v737 = vmul.f32 %v732, %v736
    %738 = vst.msk [vmem:[#allocation14 + $0x2] sm:$0x1] %vm328, %v737
    %v739 = vpack.c.bf16 %v737, %v737
    %v741 = vsel %vm342, %v739, 0
    %743 = vmatprep.subr.bf16.mxu0 0
    %744 = vmatpush1.bf16.msra.mxu0 %v348
    %745 = vmatprep.subr.bf16.mxu0 0
    %746 = vmatpush1.bf16.msra.mxu0 0
    %747 = vmatprep.subr.bf16.mxu0 0
    %748 = vmatpush1.bf16.msra.mxu0 0
    %749 = vmatprep.subr.bf16.mxu0 0
    %750 = vmatpush1.bf16.msra.mxu0 0
    %751 = vmatprep.subr.bf16.mxu0 0
    %752 = vmatpush1.bf16.msra.mxu0 0
    %753 = vmatprep.subr.bf16.mxu0 0
    %754 = vmatpush1.bf16.msra.mxu0 0
    %755 = vmatprep.subr.bf16.mxu0 0
    %756 = vmatpush1.bf16.msra.mxu0 0
    %757 = vmatprep.subr.bf16.mxu0 0
    %758 = vmatpush1.bf16.msra.mxu0 0
    %759 = vmatprep.subr.bf16.mxu0 0
    %760 = vmatpush1.bf16.msra.mxu0 0
    %761 = vmatprep.subr.bf16.mxu0 0
    %762 = vmatpush1.bf16.msra.mxu0 0
    %763 = vmatprep.subr.bf16.mxu0 0
    %764 = vmatpush1.bf16.msra.mxu0 0
    %765 = vmatprep.subr.bf16.mxu0 0
    %766 = vmatpush1.bf16.msra.mxu0 0
    %767 = vmatprep.subr.bf16.mxu0 0
    %768 = vmatpush1.bf16.msra.mxu0 0
    %769 = vmatprep.subr.bf16.mxu0 0
    %770 = vmatpush1.bf16.msra.mxu0 0
    %771 = vmatprep.subr.bf16.mxu0 0
    %772 = vmatpush1.bf16.msra.mxu0 0
    %773 = vmatprep.subr.bf16.mxu0 0
    %774 = vmatpush1.bf16.msra.mxu0 0
    %775 = vmatprep.mubr.bf16.mxu0 0
    %776 = vmatmul.mubr.bf16.gmra.mrb[0].mxu0 %v741
    %v777 = vpop.f32.mrb[0].mxu0
    %v778 = vadd.f32 0.0, %v777
    %v779 = vpop.f32.mrb[0].mxu0
    %v780 = vpop.f32.mrb[0].mxu0
    %v781 = vpop.f32.mrb[0].mxu0
    %782 = vdwg.mxu0
    %v783 = vld [vmem:[#allocation3 + $0x2] sm:$0x1]
    %v784 = vadd.f32 %v783, %v778
    %v785 = vmax.f32 %v784, 0.0
    %v786 = vpack.c.bf16 %v785, %v785
    %v788 = vsel %vm96, %v786, 0
    %790 = vmatprep.subr.bf16.mxu0 0
    %791 = vmatpush1.bf16.msra.mxu0 %v402
    %792 = vmatprep.subr.bf16.mxu0 0
    %793 = vmatpush1.bf16.msra.mxu0 %v403
    %794 = vmatprep.subr.bf16.mxu0 0
    %795 = vmatpush1.bf16.msra.mxu0 0
    %796 = vmatprep.subr.bf16.mxu0 0
    %797 = vmatpush1.bf16.msra.mxu0 0
    %798 = vmatprep.subr.bf16.mxu0 0
    %799 = vmatpush1.bf16.msra.mxu0 0
    %800 = vmatprep.subr.bf16.mxu0 0
    %801 = vmatpush1.bf16.msra.mxu0 0
    %802 = vmatprep.subr.bf16.mxu0 0
    %803 = vmatpush1.bf16.msra.mxu0 0
    %804 = vmatprep.subr.bf16.mxu0 0
    %805 = vmatpush1.bf16.msra.mxu0 0
    %806 = vmatprep.subr.bf16.mxu0 0
    %807 = vmatpush1.bf16.msra.mxu0 0
    %808 = vmatprep.subr.bf16.mxu0 0
    %809 = vmatpush1.bf16.msra.mxu0 0
    %810 = vmatprep.subr.bf16.mxu0 0
    %811 = vmatpush1.bf16.msra.mxu0 0
    %812 = vmatprep.subr.bf16.mxu0 0
    %813 = vmatpush1.bf16.msra.mxu0 0
    %814 = vmatprep.subr.bf16.mxu0 0
    %815 = vmatpush1.bf16.msra.mxu0 0
    %816 = vmatprep.subr.bf16.mxu0 0
    %817 = vmatpush1.bf16.msra.mxu0 0
    %818 = vmatprep.subr.bf16.mxu0 0
    %819 = vmatpush1.bf16.msra.mxu0 0
    %820 = vmatprep.subr.bf16.mxu0 0
    %821 = vmatpush1.bf16.msra.mxu0 0
    %822 = vmatprep.mubr.bf16.mxu0 0
    %823 = vmatmul.mubr.bf16.gmra.mrb[0].mxu0 %v788
    %v824 = vpop.f32.mrb[0].mxu0
    %v825 = vadd.f32 %v72, %v824
    %v826 = vpop.f32.mrb[0].mxu0
    %v827 = vpop.f32.mrb[0].mxu0
    %v828 = vpop.f32.mrb[0].mxu0
    %829 = vdwg.mxu0
    %v830 = vadd.f32 %v825, %v716
    %v831 = vxor.u32 %v830, 2147483648
    %v832 = vmul.f32 %v831, 1.442695
    %v833 = vpow.pop %v832
    %v834 = vadd.f32 %v833, 1.0
    %v835 = vrcp.pop %v834
    %v836 = vmul.f32 1.0, %v835
    %837 = vrot.lane.b32.xlu0 %v716, 64
    %v838 = vpop.permute.xlu0 %837
    %v840 = vmul.f32 %v836, %v838
    %842 = vrot.lane.b32.xlu0 %v840, 64
    %v843 = vpop.permute.xlu0 %842
    %v845 = vadd.f32 %v825, %v843
    %v846 = vtanh.pop %v845
    %v847 = vsub.f32 1.0, %v836
    %849 = vrot.lane.b32.xlu0 %v846, 96
    %v850 = vpop.permute.xlu0 %849
    %v852 = vmul.f32 %v847, %v850
    %v853 = vmul.f32 %v836, %v668
    %v854 = vadd.f32 %v852, %v853
    %856 = vrot.lane.b32.xlu0 %v854, 96
    %v857 = vpop.permute.xlu0 %856
    %859 = vst.msk [vmem:[#allocation4 + $0x2] sm:$0x1] %vm486, %v857
    %v860 = vpack.c.bf16 %v854, %v854
    %862 = vrot.lane.b32.xlu0 %v860, 96
    %v863 = vpop.permute.xlu0 %862
    %v865 = vsel %vm96, %v863, 0
    %867 = vmatprep.subr.bf16.mxu0 0
    %868 = vmatpush1.bf16.msra.mxu0 %v275
    %869 = vmatprep.subr.bf16.mxu0 0
    %870 = vmatpush1.bf16.msra.mxu0 %v276
    %871 = vmatprep.subr.bf16.mxu0 0
    %872 = vmatpush1.bf16.msra.mxu0 0
    %873 = vmatprep.subr.bf16.mxu0 0
    %874 = vmatpush1.bf16.msra.mxu0 0
    %875 = vmatprep.subr.bf16.mxu0 0
    %876 = vmatpush1.bf16.msra.mxu0 0
    %877 = vmatprep.subr.bf16.mxu0 0
    %878 = vmatpush1.bf16.msra.mxu0 0
    %879 = vmatprep.subr.bf16.mxu0 0
    %880 = vmatpush1.bf16.msra.mxu0 0
    %881 = vmatprep.subr.bf16.mxu0 0
    %882 = vmatpush1.bf16.msra.mxu0 0
    %883 = vmatprep.subr.bf16.mxu0 0
    %884 = vmatpush1.bf16.msra.mxu0 0
    %885 = vmatprep.subr.bf16.mxu0 0
    %886 = vmatpush1.bf16.msra.mxu0 0
    %887 = vmatprep.subr.bf16.mxu0 0
    %888 = vmatpush1.bf16.msra.mxu0 0
    %889 = vmatprep.subr.bf16.mxu0 0
    %890 = vmatpush1.bf16.msra.mxu0 0
    %891 = vmatprep.subr.bf16.mxu0 0
    %892 = vmatpush1.bf16.msra.mxu0 0
    %893 = vmatprep.subr.bf16.mxu0 0
    %894 = vmatpush1.bf16.msra.mxu0 0
    %895 = vmatprep.subr.bf16.mxu0 0
    %896 = vmatpush1.bf16.msra.mxu0 0
    %897 = vmatprep.subr.bf16.mxu0 0
    %898 = vmatpush1.bf16.msra.mxu0 0
    %899 = vmatprep.mubr.bf16.mxu0 0
    %900 = vmatmul.mubr.bf16.gmra.mrb[0].mxu0 %v865
    %v901 = vpop.f32.mrb[0].mxu0
    %v902 = vadd.f32 %v71, %v901
    %v903 = vpop.f32.mrb[0].mxu0
    %v904 = vpop.f32.mrb[0].mxu0
    %v905 = vpop.f32.mrb[0].mxu0
    %906 = vdwg.mxu0
    %v907 = vld [vmem:[#allocation2 + $0x3] sm:$0x1]
    %909 = vrot.lane.b32.xlu0 %v902, 32
    %v910 = vpop.permute.xlu0 %909
    %v912 = vadd.f32 %v907, %v910
    %v913 = vsel %vm328, %v912, -inf
    %914 = vmax.xlane.f32.xlu0 %v913
    %v915 = vpop.xlane.xlu0 %914
    %v916 = vsub.f32 %v912, %v915
    %v917 = vmul.f32 %v916, 1.442695
    %v918 = vpow.pop %v917
    %v919 = vsel %vm328, %v918, 0.0
    %920 = vadd.xlane.f32.xlu0 %v919
    %v921 = vpop.xlane.xlu0 %920
    %v922 = vrcp.pop %v921
    %v923 = vmul.f32 %v918, %v922
    %924 = vst.msk [vmem:[#allocation14 + $0x3] sm:$0x1] %vm328, %v923
    %v925 = vpack.c.bf16 %v923, %v923
    %v927 = vsel %vm342, %v925, 0
    %929 = vmatprep.subr.bf16.mxu0 0
    %930 = vmatpush1.bf16.msra.mxu0 %v348
    %931 = vmatprep.subr.bf16.mxu0 0
    %932 = vmatpush1.bf16.msra.mxu0 0
    %933 = vmatprep.subr.bf16.mxu0 0
    %934 = vmatpush1.bf16.msra.mxu0 0
    %935 = vmatprep.subr.bf16.mxu0 0
    %936 = vmatpush1.bf16.msra.mxu0 0
    %937 = vmatprep.subr.bf16.mxu0 0
    %938 = vmatpush1.bf16.msra.mxu0 0
    %939 = vmatprep.subr.bf16.mxu0 0
    %940 = vmatpush1.bf16.msra.mxu0 0
    %941 = vmatprep.subr.bf16.mxu0 0
    %942 = vmatpush1.bf16.msra.mxu0 0
    %943 = vmatprep.subr.bf16.mxu0 0
    %944 = vmatpush1.bf16.msra.mxu0 0
    %945 = vmatprep.subr.bf16.mxu0 0
    %946 = vmatpush1.bf16.msra.mxu0 0
    %947 = vmatprep.subr.bf16.mxu0 0
    %948 = vmatpush1.bf16.msra.mxu0 0
    %949 = vmatprep.subr.bf16.mxu0 0
    %950 = vmatpush1.bf16.msra.mxu0 0
    %951 = vmatprep.subr.bf16.mxu0 0
    %952 = vmatpush1.bf16.msra.mxu0 0
    %953 = vmatprep.subr.bf16.mxu0 0
    %954 = vmatpush1.bf16.msra.mxu0 0
    %955 = vmatprep.subr.bf16.mxu0 0
    %956 = vmatpush1.bf16.msra.mxu0 0
    %957 = vmatprep.subr.bf16.mxu0 0
    %958 = vmatpush1.bf16.msra.mxu0 0
    %959 = vmatprep.subr.bf16.mxu0 0
    %960 = vmatpush1.bf16.msra.mxu0 0
    %961 = vmatprep.mubr.bf16.mxu0 0
    %962 = vmatmul.mubr.bf16.gmra.mrb[0].mxu0 %v927
    %v963 = vpop.f32.mrb[0].mxu0
    %v964 = vadd.f32 0.0, %v963
    %v965 = vpop.f32.mrb[0].mxu0
    %v966 = vpop.f32.mrb[0].mxu0
    %v967 = vpop.f32.mrb[0].mxu0
    %968 = vdwg.mxu0
    %v969 = vld [vmem:[#allocation3 + $0x3] sm:$0x1]
    %v970 = vadd.f32 %v969, %v964
    %v971 = vmax.f32 %v970, 0.0
    %v972 = vpack.c.bf16 %v971, %v971
    %v974 = vsel %vm96, %v972, 0
    %976 = vmatprep.subr.bf16.mxu0 0
    %977 = vmatpush1.bf16.msra.mxu0 %v402
    %978 = vmatprep.subr.bf16.mxu0 0
    %979 = vmatpush1.bf16.msra.mxu0 %v403
    %980 = vmatprep.subr.bf16.mxu0 0
    %981 = vmatpush1.bf16.msra.mxu0 0
    %982 = vmatprep.subr.bf16.mxu0 0
    %983 = vmatpush1.bf16.msra.mxu0 0
    %984 = vmatprep.subr.bf16.mxu0 0
    %985 = vmatpush1.bf16.msra.mxu0 0
    %986 = vmatprep.subr.bf16.mxu0 0
    %987 = vmatpush1.bf16.msra.mxu0 0
    %988 = vmatprep.subr.bf16.mxu0 0
    %989 = vmatpush1.bf16.msra.mxu0 0
    %990 = vmatprep.subr.bf16.mxu0 0
    %991 = vmatpush1.bf16.msra.mxu0 0
    %992 = vmatprep.subr.bf16.mxu0 0
    %993 = vmatpush1.bf16.msra.mxu0 0
    %994 = vmatprep.subr.bf16.mxu0 0
    %995 = vmatpush1.bf16.msra.mxu0 0
    %996 = vmatprep.subr.bf16.mxu0 0
    %997 = vmatpush1.bf16.msra.mxu0 0
    %998 = vmatprep.subr.bf16.mxu0 0
    %999 = vmatpush1.bf16.msra.mxu0 0
    %1000 = vmatprep.subr.bf16.mxu0 0
    %1001 = vmatpush1.bf16.msra.mxu0 0
    %1002 = vmatprep.subr.bf16.mxu0 0
    %1003 = vmatpush1.bf16.msra.mxu0 0
    %1004 = vmatprep.subr.bf16.mxu0 0
    %1005 = vmatpush1.bf16.msra.mxu0 0
    %1006 = vmatprep.subr.bf16.mxu0 0
    %1007 = vmatpush1.bf16.msra.mxu0 0
    %1008 = vmatprep.mubr.bf16.mxu0 0
    %1009 = vmatmul.mubr.bf16.gmra.mrb[0].mxu0 %v974
    %v1010 = vpop.f32.mrb[0].mxu0
    %v1011 = vadd.f32 %v72, %v1010
    %v1012 = vpop.f32.mrb[0].mxu0
    %v1013 = vpop.f32.mrb[0].mxu0
    %v1014 = vpop.f32.mrb[0].mxu0
    %1015 = vdwg.mxu0
    %v1016 = vadd.f32 %v1011, %v902
    %v1017 = vxor.u32 %v1016, 2147483648
    %v1018 = vmul.f32 %v1017, 1.442695
    %v1019 = vpow.pop %v1018
    %v1020 = vadd.f32 %v1019, 1.0
    %v1021 = vrcp.pop %v1020
    %v1022 = vmul.f32 1.0, %v1021
    %1023 = vrot.lane.b32.xlu0 %v902, 64
    %v1024 = vpop.permute.xlu0 %1023
    %v1026 = vmul.f32 %v1022, %v1024
    %1028 = vrot.lane.b32.xlu0 %v1026, 64
    %v1029 = vpop.permute.xlu0 %1028
    %v1031 = vadd.f32 %v1011, %v1029
    %v1032 = vtanh.pop %v1031
    %v1033 = vsub.f32 1.0, %v1022
    %1035 = vrot.lane.b32.xlu0 %v1032, 96
    %v1036 = vpop.permute.xlu0 %1035
    %v1038 = vmul.f32 %v1033, %v1036
    %v1039 = vmul.f32 %v1022, %v854
    %v1040 = vadd.f32 %v1038, %v1039
    %1042 = vrot.lane.b32.xlu0 %v1040, 96
    %v1043 = vpop.permute.xlu0 %1042
    %1045 = vst.msk [vmem:[#allocation4 + $0x3] sm:$0x1] %vm486, %v1043
    %v1046 = vpack.c.bf16 %v1040, %v1040
    %1048 = vrot.lane.b32.xlu0 %v1046, 96
    %v1049 = vpop.permute.xlu0 %1048
    %v1051 = vsel %vm96, %v1049, 0
    %1053 = vmatprep.subr.bf16.mxu0 0
    %1054 = vmatpush1.bf16.msra.mxu0 %v275
    %1055 = vmatprep.subr.bf16.mxu0 0
    %1056 = vmatpush1.bf16.msra.mxu0 %v276
    %1057 = vmatprep.subr.bf16.mxu0 0
    %1058 = vmatpush1.bf16.msra.mxu0 0
    %1059 = vmatprep.subr.bf16.mxu0 0
    %1060 = vmatpush1.bf16.msra.mxu0 0
    %1061 = vmatprep.subr.bf16.mxu0 0
    %1062 = vmatpush1.bf16.msra.mxu0 0
    %1063 = vmatprep.subr.bf16.mxu0 0
    %1064 = vmatpush1.bf16.msra.mxu0 0
    %1065 = vmatprep.subr.bf16.mxu0 0
    %1066 = vmatpush1.bf16.msra.mxu0 0
    %1067 = vmatprep.subr.bf16.mxu0 0
    %1068 = vmatpush1.bf16.msra.mxu0 0
    %1069 = vmatprep.subr.bf16.mxu0 0
    %1070 = vmatpush1.bf16.msra.mxu0 0
    %1071 = vmatprep.subr.bf16.mxu0 0
    %1072 = vmatpush1.bf16.msra.mxu0 0
    %1073 = vmatprep.subr.bf16.mxu0 0
    %1074 = vmatpush1.bf16.msra.mxu0 0
    %1075 = vmatprep.subr.bf16.mxu0 0
    %1076 = vmatpush1.bf16.msra.mxu0 0
    %1077 = vmatprep.subr.bf16.mxu0 0
    %1078 = vmatpush1.bf16.msra.mxu0 0
    %1079 = vmatprep.subr.bf16.mxu0 0
    %1080 = vmatpush1.bf16.msra.mxu0 0
    %1081 = vmatprep.subr.bf16.mxu0 0
    %1082 = vmatpush1.bf16.msra.mxu0 0
    %1083 = vmatprep.subr.bf16.mxu0 0
    %1084 = vmatpush1.bf16.msra.mxu0 0
    %1085 = vmatprep.mubr.bf16.mxu0 0
    %1086 = vmatmul.mubr.bf16.gmra.mrb[0].mxu0 %v1051
    %v1087 = vpop.f32.mrb[0].mxu0
    %v1088 = vadd.f32 %v71, %v1087
    %v1089 = vpop.f32.mrb[0].mxu0
    %v1090 = vpop.f32.mrb[0].mxu0
    %v1091 = vpop.f32.mrb[0].mxu0
    %1092 = vdwg.mxu0
    %v1093 = vld [vmem:[#allocation2 + $0x4] sm:$0x1]
    %1095 = vrot.lane.b32.xlu0 %v1088, 32
    %v1096 = vpop.permute.xlu0 %1095
    %v1098 = vadd.f32 %v1093, %v1096
    %v1099 = vsel %vm328, %v1098, -inf
    %1100 = vmax.xlane.f32.xlu0 %v1099
    %v1101 = vpop.xlane.xlu0 %1100
    %v1102 = vsub.f32 %v1098, %v1101
    %v1103 = vmul.f32 %v1102, 1.442695
    %v1104 = vpow.pop %v1103
    %v1105 = vsel %vm328, %v1104, 0.0
    %1106 = vadd.xlane.f32.xlu0 %v1105
    %v1107 = vpop.xlane.xlu0 %1106
    %v1108 = vrcp.pop %v1107
    %v1109 = vmul.f32 %v1104, %v1108
    %1110 = vst.msk [vmem:[#allocation14 + $0x4] sm:$0x1] %vm328, %v1109
    %v1111 = vpack.c.bf16 %v1109, %v1109
    %v1113 = vsel %vm342, %v1111, 0
    %1115 = vmatprep.subr.bf16.mxu0 0
    %1116 = vmatpush1.bf16.msra.mxu0 %v348
    %1117 = vmatprep.subr.bf16.mxu0 0
    %1118 = vmatpush1.bf16.msra.mxu0 0
    %1119 = vmatprep.subr.bf16.mxu0 0
    %1120 = vmatpush1.bf16.msra.mxu0 0
    %1121 = vmatprep.subr.bf16.mxu0 0
    %1122 = vmatpush1.bf16.msra.mxu0 0
    %1123 = vmatprep.subr.bf16.mxu0 0
    %1124 = vmatpush1.bf16.msra.mxu0 0
    %1125 = vmatprep.subr.bf16.mxu0 0
    %1126 = vmatpush1.bf16.msra.mxu0 0
    %1127 = vmatprep.subr.bf16.mxu0 0
    %1128 = vmatpush1.bf16.msra.mxu0 0
    %1129 = vmatprep.subr.bf16.mxu0 0
    %1130 = vmatpush1.bf16.msra.mxu0 0
    %1131 = vmatprep.subr.bf16.mxu0 0
    %1132 = vmatpush1.bf16.msra.mxu0 0
    %1133 = vmatprep.subr.bf16.mxu0 0
    %1134 = vmatpush1.bf16.msra.mxu0 0
    %1135 = vmatprep.subr.bf16.mxu0 0
    %1136 = vmatpush1.bf16.msra.mxu0 0
    %1137 = vmatprep.subr.bf16.mxu0 0
    %1138 = vmatpush1.bf16.msra.mxu0 0
    %1139 = vmatprep.subr.bf16.mxu0 0
    %1140 = vmatpush1.bf16.msra.mxu0 0
    %1141 = vmatprep.subr.bf16.mxu0 0
    %1142 = vmatpush1.bf16.msra.mxu0 0
    %1143 = vmatprep.subr.bf16.mxu0 0
    %1144 = vmatpush1.bf16.msra.mxu0 0
    %1145 = vmatprep.subr.bf16.mxu0 0
    %1146 = vmatpush1.bf16.msra.mxu0 0
    %1147 = vmatprep.mubr.bf16.mxu0 0
    %1148 = vmatmul.mubr.bf16.gmra.mrb[0].mxu0 %v1113
    %v1149 = vpop.f32.mrb[0].mxu0
    %v1150 = vadd.f32 0.0, %v1149
    %v1151 = vpop.f32.mrb[0].mxu0
    %v1152 = vpop.f32.mrb[0].mxu0
    %v1153 = vpop.f32.mrb[0].mxu0
    %1154 = vdwg.mxu0
    %v1155 = vld [vmem:[#allocation3 + $0x4] sm:$0x1]
    %v1156 = vadd.f32 %v1155, %v1150
    %v1157 = vmax.f32 %v1156, 0.0
    %v1158 = vpack.c.bf16 %v1157, %v1157
    %v1160 = vsel %vm96, %v1158, 0
    %1162 = vmatprep.subr.bf16.mxu0 0
    %1163 = vmatpush1.bf16.msra.mxu0 %v402
    %1164 = vmatprep.subr.bf16.mxu0 0
    %1165 = vmatpush1.bf16.msra.mxu0 %v403
    %1166 = vmatprep.subr.bf16.mxu0 0
    %1167 = vmatpush1.bf16.msra.mxu0 0
    %1168 = vmatprep.subr.bf16.mxu0 0
    %1169 = vmatpush1.bf16.msra.mxu0 0
    %1170 = vmatprep.subr.bf16.mxu0 0
    %1171 = vmatpush1.bf16.msra.mxu0 0
    %1172 = vmatprep.subr.bf16.mxu0 0
    %1173 = vmatpush1.bf16.msra.mxu0 0
    %1174 = vmatprep.subr.bf16.mxu0 0
    %1175 = vmatpush1.bf16.msra.mxu0 0
    %1176 = vmatprep.subr.bf16.mxu0 0
    %1177 = vmatpush1.bf16.msra.mxu0 0
    %1178 = vmatprep.subr.bf16.mxu0 0
    %1179 = vmatpush1.bf16.msra.mxu0 0
    %1180 = vmatprep.subr.bf16.mxu0 0
    %1181 = vmatpush1.bf16.msra.mxu0 0
    %1182 = vmatprep.subr.bf16.mxu0 0
    %1183 = vmatpush1.bf16.msra.mxu0 0
    %1184 = vmatprep.subr.bf16.mxu0 0
    %1185 = vmatpush1.bf16.msra.mxu0 0
    %1186 = vmatprep.subr.bf16.mxu0 0
    %1187 = vmatpush1.bf16.msra.mxu0 0
    %1188 = vmatprep.subr.bf16.mxu0 0
    %1189 = vmatpush1.bf16.msra.mxu0 0
    %1190 = vmatprep.subr.bf16.mxu0 0
    %1191 = vmatpush1.bf16.msra.mxu0 0
    %1192 = vmatprep.subr.bf16.mxu0 0
    %1193 = vmatpush1.bf16.msra.mxu0 0
    %1194 = vmatprep.mubr.bf16.mxu0 0
    %1195 = vmatmul.mubr.bf16.gmra.mrb[0].mxu0 %v1160
    %v1196 = vpop.f32.mrb[0].mxu0
    %v1197 = vadd.f32 %v72, %v1196
    %v1198 = vpop.f32.mrb[0].mxu0
    %v1199 = vpop.f32.mrb[0].mxu0
    %v1200 = vpop.f32.mrb[0].mxu0
    %1201 = vdwg.mxu0
    %v1202 = vadd.f32 %v1197, %v1088
    %v1203 = vxor.u32 %v1202, 2147483648
    %v1204 = vmul.f32 %v1203, 1.442695
    %v1205 = vpow.pop %v1204
    %v1206 = vadd.f32 %v1205, 1.0
    %v1207 = vrcp.pop %v1206
    %v1208 = vmul.f32 1.0, %v1207
    %1209 = vrot.lane.b32.xlu0 %v1088, 64
    %v1210 = vpop.permute.xlu0 %1209
    %v1212 = vmul.f32 %v1208, %v1210
    %1214 = vrot.lane.b32.xlu0 %v1212, 64
    %v1215 = vpop.permute.xlu0 %1214
    %v1217 = vadd.f32 %v1197, %v1215
    %v1218 = vtanh.pop %v1217
    %v1219 = vsub.f32 1.0, %v1208
    %1221 = vrot.lane.b32.xlu0 %v1218, 96
    %v1222 = vpop.permute.xlu0 %1221
    %v1224 = vmul.f32 %v1219, %v1222
    %v1225 = vmul.f32 %v1208, %v1040
    %v1226 = vadd.f32 %v1224, %v1225
    %1228 = vrot.lane.b32.xlu0 %v1226, 96
    %v1229 = vpop.permute.xlu0 %1228
    %1231 = vst.msk [vmem:[#allocation4 + $0x4] sm:$0x1] %vm486, %v1229
    %v1232 = vpack.c.bf16 %v1226, %v1226
    %1234 = vrot.lane.b32.xlu0 %v1232, 96
    %v1235 = vpop.permute.xlu0 %1234
    %v1237 = vsel %vm96, %v1235, 0
    %1239 = vmatprep.subr.bf16.mxu0 0
    %1240 = vmatpush1.bf16.msra.mxu0 %v275
    %1241 = vmatprep.subr.bf16.mxu0 0
    %1242 = vmatpush1.bf16.msra.mxu0 %v276
    %1243 = vmatprep.subr.bf16.mxu0 0
    %1244 = vmatpush1.bf16.msra.mxu0 0
    %1245 = vmatprep.subr.bf16.mxu0 0
    %1246 = vmatpush1.bf16.msra.mxu0 0
    %1247 = vmatprep.subr.bf16.mxu0 0
    %1248 = vmatpush1.bf16.msra.mxu0 0
    %1249 = vmatprep.subr.bf16.mxu0 0
    %1250 = vmatpush1.bf16.msra.mxu0 0
    %1251 = vmatprep.subr.bf16.mxu0 0
    %1252 = vmatpush1.bf16.msra.mxu0 0
    %1253 = vmatprep.subr.bf16.mxu0 0
    %1254 = vmatpush1.bf16.msra.mxu0 0
    %1255 = vmatprep.subr.bf16.mxu0 0
    %1256 = vmatpush1.bf16.msra.mxu0 0
    %1257 = vmatprep.subr.bf16.mxu0 0
    %1258 = vmatpush1.bf16.msra.mxu0 0
    %1259 = vmatprep.subr.bf16.mxu0 0
    %1260 = vmatpush1.bf16.msra.mxu0 0
    %1261 = vmatprep.subr.bf16.mxu0 0
    %1262 = vmatpush1.bf16.msra.mxu0 0
    %1263 = vmatprep.subr.bf16.mxu0 0
    %1264 = vmatpush1.bf16.msra.mxu0 0
    %1265 = vmatprep.subr.bf16.mxu0 0
    %1266 = vmatpush1.bf16.msra.mxu0 0
    %1267 = vmatprep.subr.bf16.mxu0 0
    %1268 = vmatpush1.bf16.msra.mxu0 0
    %1269 = vmatprep.subr.bf16.mxu0 0
    %1270 = vmatpush1.bf16.msra.mxu0 0
    %1271 = vmatprep.mubr.bf16.mxu0 0
    %1272 = vmatmul.mubr.bf16.gmra.mrb[0].mxu0 %v1237
    %v1273 = vpop.f32.mrb[0].mxu0
    %v1274 = vadd.f32 %v71, %v1273
    %v1275 = vpop.f32.mrb[0].mxu0
    %v1276 = vpop.f32.mrb[0].mxu0
    %v1277 = vpop.f32.mrb[0].mxu0
    %1278 = vdwg.mxu0
    %v1279 = vld [vmem:[#allocation2 + $0x5] sm:$0x1]
    %1281 = vrot.lane.b32.xlu0 %v1274, 32
    %v1282 = vpop.permute.xlu0 %1281
    %v1284 = vadd.f32 %v1279, %v1282
    %v1285 = vsel %vm328, %v1284, -inf
    %1286 = vmax.xlane.f32.xlu0 %v1285
    %v1287 = vpop.xlane.xlu0 %1286
    %v1288 = vsub.f32 %v1284, %v1287
    %v1289 = vmul.f32 %v1288, 1.442695
    %v1290 = vpow.pop %v1289
    %v1291 = vsel %vm328, %v1290, 0.0
    %1292 = vadd.xlane.f32.xlu0 %v1291
    %v1293 = vpop.xlane.xlu0 %1292
    %v1294 = vrcp.pop %v1293
    %v1295 = vmul.f32 %v1290, %v1294
    %1296 = vst.msk [vmem:[#allocation14 + $0x5] sm:$0x1] %vm328, %v1295
    %v1297 = vpack.c.bf16 %v1295, %v1295
    %v1299 = vsel %vm342, %v1297, 0
    %1301 = vmatprep.subr.bf16.mxu0 0
    %1302 = vmatpush1.bf16.msra.mxu0 %v348
    %1303 = vmatprep.subr.bf16.mxu0 0
    %1304 = vmatpush1.bf16.msra.mxu0 0
    %1305 = vmatprep.subr.bf16.mxu0 0
    %1306 = vmatpush1.bf16.msra.mxu0 0
    %1307 = vmatprep.subr.bf16.mxu0 0
    %1308 = vmatpush1.bf16.msra.mxu0 0
    %1309 = vmatprep.subr.bf16.mxu0 0
    %1310 = vmatpush1.bf16.msra.mxu0 0
    %1311 = vmatprep.subr.bf16.mxu0 0
    %1312 = vmatpush1.bf16.msra.mxu0 0
    %1313 = vmatprep.subr.bf16.mxu0 0
    %1314 = vmatpush1.bf16.msra.mxu0 0
    %1315 = vmatprep.subr.bf16.mxu0 0
    %1316 = vmatpush1.bf16.msra.mxu0 0
    %1317 = vmatprep.subr.bf16.mxu0 0
    %1318 = vmatpush1.bf16.msra.mxu0 0
    %1319 = vmatprep.subr.bf16.mxu0 0
    %1320 = vmatpush1.bf16.msra.mxu0 0
    %1321 = vmatprep.subr.bf16.mxu0 0
    %1322 = vmatpush1.bf16.msra.mxu0 0
    %1323 = vmatprep.subr.bf16.mxu0 0
    %1324 = vmatpush1.bf16.msra.mxu0 0
    %1325 = vmatprep.subr.bf16.mxu0 0
    %1326 = vmatpush1.bf16.msra.mxu0 0
    %1327 = vmatprep.subr.bf16.mxu0 0
    %1328 = vmatpush1.bf16.msra.mxu0 0
    %1329 = vmatprep.subr.bf16.mxu0 0
    %1330 = vmatpush1.bf16.msra.mxu0 0
    %1331 = vmatprep.subr.bf16.mxu0 0
    %1332 = vmatpush1.bf16.msra.mxu0 0
    %1333 = vmatprep.mubr.bf16.mxu0 0
    %1334 = vmatmul.mubr.bf16.gmra.mrb[0].mxu0 %v1299
    %v1335 = vpop.f32.mrb[0].mxu0
    %v1336 = vadd.f32 0.0, %v1335
    %v1337 = vpop.f32.mrb[0].mxu0
    %v1338 = vpop.f32.mrb[0].mxu0
    %v1339 = vpop.f32.mrb[0].mxu0
    %1340 = vdwg.mxu0
    %v1341 = vld [vmem:[#allocation3 + $0x5] sm:$0x1]
    %v1342 = vadd.f32 %v1341, %v1336
    %v1343 = vmax.f32 %v1342, 0.0
    %v1344 = vpack.c.bf16 %v1343, %v1343
    %v1346 = vsel %vm96, %v1344, 0
    %1348 = vmatprep.subr.bf16.mxu0 0
    %1349 = vmatpush1.bf16.msra.mxu0 %v402
    %1350 = vmatprep.subr.bf16.mxu0 0
    %1351 = vmatpush1.bf16.msra.mxu0 %v403
    %1352 = vmatprep.subr.bf16.mxu0 0
    %1353 = vmatpush1.bf16.msra.mxu0 0
    %1354 = vmatprep.subr.bf16.mxu0 0
    %1355 = vmatpush1.bf16.msra.mxu0 0
    %1356 = vmatprep.subr.bf16.mxu0 0
    %1357 = vmatpush1.bf16.msra.mxu0 0
    %1358 = vmatprep.subr.bf16.mxu0 0
    %1359 = vmatpush1.bf16.msra.mxu0 0
    %1360 = vmatprep.subr.bf16.mxu0 0
    %1361 = vmatpush1.bf16.msra.mxu0 0
    %1362 = vmatprep.subr.bf16.mxu0 0
    %1363 = vmatpush1.bf16.msra.mxu0 0
    %1364 = vmatprep.subr.bf16.mxu0 0
    %1365 = vmatpush1.bf16.msra.mxu0 0
    %1366 = vmatprep.subr.bf16.mxu0 0
    %1367 = vmatpush1.bf16.msra.mxu0 0
    %1368 = vmatprep.subr.bf16.mxu0 0
    %1369 = vmatpush1.bf16.msra.mxu0 0
    %1370 = vmatprep.subr.bf16.mxu0 0
    %1371 = vmatpush1.bf16.msra.mxu0 0
    %1372 = vmatprep.subr.bf16.mxu0 0
    %1373 = vmatpush1.bf16.msra.mxu0 0
    %1374 = vmatprep.subr.bf16.mxu0 0
    %1375 = vmatpush1.bf16.msra.mxu0 0
    %1376 = vmatprep.subr.bf16.mxu0 0
    %1377 = vmatpush1.bf16.msra.mxu0 0
    %1378 = vmatprep.subr.bf16.mxu0 0
    %1379 = vmatpush1.bf16.msra.mxu0 0
    %1380 = vmatprep.mubr.bf16.mxu0 0
    %1381 = vmatmul.mubr.bf16.gmra.mrb[0].mxu0 %v1346
    %v1382 = vpop.f32.mrb[0].mxu0
    %v1383 = vadd.f32 %v72, %v1382
    %v1384 = vpop.f32.mrb[0].mxu0
    %v1385 = vpop.f32.mrb[0].mxu0
    %v1386 = vpop.f32.mrb[0].mxu0
    %1387 = vdwg.mxu0
    %v1388 = vadd.f32 %v1383, %v1274
    %v1389 = vxor.u32 %v1388, 2147483648
    %v1390 = vmul.f32 %v1389, 1.442695
    %v1391 = vpow.pop %v1390
    %v1392 = vadd.f32 %v1391, 1.0
    %v1393 = vrcp.pop %v1392
    %v1394 = vmul.f32 1.0, %v1393
    %1395 = vrot.lane.b32.xlu0 %v1274, 64
    %v1396 = vpop.permute.xlu0 %1395
    %v1398 = vmul.f32 %v1394, %v1396
    %1400 = vrot.lane.b32.xlu0 %v1398, 64
    %v1401 = vpop.permute.xlu0 %1400
    %v1403 = vadd.f32 %v1383, %v1401
    %v1404 = vtanh.pop %v1403
    %v1405 = vsub.f32 1.0, %v1394
    %1407 = vrot.lane.b32.xlu0 %v1404, 96
    %v1408 = vpop.permute.xlu0 %1407
    %v1410 = vmul.f32 %v1405, %v1408
    %v1411 = vmul.f32 %v1394, %v1226
    %v1412 = vadd.f32 %v1410, %v1411
    %1414 = vrot.lane.b32.xlu0 %v1412, 96
    %v1415 = vpop.permute.xlu0 %1414
    %1417 = vst.msk [vmem:[#allocation4 + $0x5] sm:$0x1] %vm486, %v1415
    %v1418 = vpack.c.bf16 %v1412, %v1412
    %1420 = vrot.lane.b32.xlu0 %v1418, 96
    %v1421 = vpop.permute.xlu0 %1420
    %v1423 = vsel %vm96, %v1421, 0
    %1425 = vmatprep.subr.bf16.mxu0 0
    %1426 = vmatpush1.bf16.msra.mxu0 %v275
    %1427 = vmatprep.subr.bf16.mxu0 0
    %1428 = vmatpush1.bf16.msra.mxu0 %v276
    %1429 = vmatprep.subr.bf16.mxu0 0
    %1430 = vmatpush1.bf16.msra.mxu0 0
    %1431 = vmatprep.subr.bf16.mxu0 0
    %1432 = vmatpush1.bf16.msra.mxu0 0
    %1433 = vmatprep.subr.bf16.mxu0 0
    %1434 = vmatpush1.bf16.msra.mxu0 0
    %1435 = vmatprep.subr.bf16.mxu0 0
    %1436 = vmatpush1.bf16.msra.mxu0 0
    %1437 = vmatprep.subr.bf16.mxu0 0
    %1438 = vmatpush1.bf16.msra.mxu0 0
    %1439 = vmatprep.subr.bf16.mxu0 0
    %1440 = vmatpush1.bf16.msra.mxu0 0
    %1441 = vmatprep.subr.bf16.mxu0 0
    %1442 = vmatpush1.bf16.msra.mxu0 0
    %1443 = vmatprep.subr.bf16.mxu0 0
    %1444 = vmatpush1.bf16.msra.mxu0 0
    %1445 = vmatprep.subr.bf16.mxu0 0
    %1446 = vmatpush1.bf16.msra.mxu0 0
    %1447 = vmatprep.subr.bf16.mxu0 0
    %1448 = vmatpush1.bf16.msra.mxu0 0
    %1449 = vmatprep.subr.bf16.mxu0 0
    %1450 = vmatpush1.bf16.msra.mxu0 0
    %1451 = vmatprep.subr.bf16.mxu0 0
    %1452 = vmatpush1.bf16.msra.mxu0 0
    %1453 = vmatprep.subr.bf16.mxu0 0
    %1454 = vmatpush1.bf16.msra.mxu0 0
    %1455 = vmatprep.subr.bf16.mxu0 0
    %1456 = vmatpush1.bf16.msra.mxu0 0
    %1457 = vmatprep.mubr.bf16.mxu0 0
    %1458 = vmatmul.mubr.bf16.gmra.mrb[0].mxu0 %v1423
    %v1459 = vpop.f32.mrb[0].mxu0
    %v1460 = vadd.f32 %v71, %v1459
    %v1461 = vpop.f32.mrb[0].mxu0
    %v1462 = vpop.f32.mrb[0].mxu0
    %v1463 = vpop.f32.mrb[0].mxu0
    %1464 = vdwg.mxu0
    %v1465 = vld [vmem:[#allocation2 + $0x6] sm:$0x1]
    %1467 = vrot.lane.b32.xlu0 %v1460, 32
    %v1468 = vpop.permute.xlu0 %1467
    %v1470 = vadd.f32 %v1465, %v1468
    %v1471 = vsel %vm328, %v1470, -inf
    %1472 = vmax.xlane.f32.xlu0 %v1471
    %v1473 = vpop.xlane.xlu0 %1472
    %v1474 = vsub.f32 %v1470, %v1473
    %v1475 = vmul.f32 %v1474, 1.442695
    %v1476 = vpow.pop %v1475
    %v1477 = vsel %vm328, %v1476, 0.0
    %1478 = vadd.xlane.f32.xlu0 %v1477
    %v1479 = vpop.xlane.xlu0 %1478
    %v1480 = vrcp.pop %v1479
    %v1481 = vmul.f32 %v1476, %v1480
    %1482 = vst.msk [vmem:[#allocation14 + $0x6] sm:$0x1] %vm328, %v1481
    %v1483 = vpack.c.bf16 %v1481, %v1481
    %v1485 = vsel %vm342, %v1483, 0
    %1487 = vmatprep.subr.bf16.mxu0 0
    %1488 = vmatpush1.bf16.msra.mxu0 %v348
    %1489 = vmatprep.subr.bf16.mxu0 0
    %1490 = vmatpush1.bf16.msra.mxu0 0
    %1491 = vmatprep.subr.bf16.mxu0 0
    %1492 = vmatpush1.bf16.msra.mxu0 0
    %1493 = vmatprep.subr.bf16.mxu0 0
    %1494 = vmatpush1.bf16.msra.mxu0 0
    %1495 = vmatprep.subr.bf16.mxu0 0
    %1496 = vmatpush1.bf16.msra.mxu0 0
    %1497 = vmatprep.subr.bf16.mxu0 0
    %1498 = vmatpush1.bf16.msra.mxu0 0
    %1499 = vmatprep.subr.bf16.mxu0 0
    %1500 = vmatpush1.bf16.msra.mxu0 0
    %1501 = vmatprep.subr.bf16.mxu0 0
    %1502 = vmatpush1.bf16.msra.mxu0 0
    %1503 = vmatprep.subr.bf16.mxu0 0
    %1504 = vmatpush1.bf16.msra.mxu0 0
    %1505 = vmatprep.subr.bf16.mxu0 0
    %1506 = vmatpush1.bf16.msra.mxu0 0
    %1507 = vmatprep.subr.bf16.mxu0 0
    %1508 = vmatpush1.bf16.msra.mxu0 0
    %1509 = vmatprep.subr.bf16.mxu0 0
    %1510 = vmatpush1.bf16.msra.mxu0 0
    %1511 = vmatprep.subr.bf16.mxu0 0
    %1512 = vmatpush1.bf16.msra.mxu0 0
    %1513 = vmatprep.subr.bf16.mxu0 0
    %1514 = vmatpush1.bf16.msra.mxu0 0
    %1515 = vmatprep.subr.bf16.mxu0 0
    %1516 = vmatpush1.bf16.msra.mxu0 0
    %1517 = vmatprep.subr.bf16.mxu0 0
    %1518 = vmatpush1.bf16.msra.mxu0 0
    %1519 = vmatprep.mubr.bf16.mxu0 0
    %1520 = vmatmul.mubr.bf16.gmra.mrb[0].mxu0 %v1485
    %v1521 = vpop.f32.mrb[0].mxu0
    %v1522 = vadd.f32 0.0, %v1521
    %v1523 = vpop.f32.mrb[0].mxu0
    %v1524 = vpop.f32.mrb[0].mxu0
    %v1525 = vpop.f32.mrb[0].mxu0
    %1526 = vdwg.mxu0
    %v1527 = vld [vmem:[#allocation3 + $0x6] sm:$0x1]
    %v1528 = vadd.f32 %v1527, %v1522
    %v1529 = vmax.f32 %v1528, 0.0
    %v1530 = vpack.c.bf16 %v1529, %v1529
    %v1532 = vsel %vm96, %v1530, 0
    %1534 = vmatprep.subr.bf16.mxu0 0
    %1535 = vmatpush1.bf16.msra.mxu0 %v402
    %1536 = vmatprep.subr.bf16.mxu0 0
    %1537 = vmatpush1.bf16.msra.mxu0 %v403
    %1538 = vmatprep.subr.bf16.mxu0 0
    %1539 = vmatpush1.bf16.msra.mxu0 0
    %1540 = vmatprep.subr.bf16.mxu0 0
    %1541 = vmatpush1.bf16.msra.mxu0 0
    %1542 = vmatprep.subr.bf16.mxu0 0
    %1543 = vmatpush1.bf16.msra.mxu0 0
    %1544 = vmatprep.subr.bf16.mxu0 0
    %1545 = vmatpush1.bf16.msra.mxu0 0
    %1546 = vmatprep.subr.bf16.mxu0 0
    %1547 = vmatpush1.bf16.msra.mxu0 0
    %1548 = vmatprep.subr.bf16.mxu0 0
    %1549 = vmatpush1.bf16.msra.mxu0 0
    %1550 = vmatprep.subr.bf16.mxu0 0
    %1551 = vmatpush1.bf16.msra.mxu0 0
    %1552 = vmatprep.subr.bf16.mxu0 0
    %1553 = vmatpush1.bf16.msra.mxu0 0
    %1554 = vmatprep.subr.bf16.mxu0 0
    %1555 = vmatpush1.bf16.msra.mxu0 0
    %1556 = vmatprep.subr.bf16.mxu0 0
    %1557 = vmatpush1.bf16.msra.mxu0 0
    %1558 = vmatprep.subr.bf16.mxu0 0
    %1559 = vmatpush1.bf16.msra.mxu0 0
    %1560 = vmatprep.subr.bf16.mxu0 0
    %1561 = vmatpush1.bf16.msra.mxu0 0
    %1562 = vmatprep.subr.bf16.mxu0 0
    %1563 = vmatpush1.bf16.msra.mxu0 0
    %1564 = vmatprep.subr.bf16.mxu0 0
    %1565 = vmatpush1.bf16.msra.mxu0 0
    %1566 = vmatprep.mubr.bf16.mxu0 0
    %1567 = vmatmul.mubr.bf16.gmra.mrb[0].mxu0 %v1532
    %v1568 = vpop.f32.mrb[0].mxu0
    %v1569 = vadd.f32 %v72, %v1568
    %v1570 = vpop.f32.mrb[0].mxu0
    %v1571 = vpop.f32.mrb[0].mxu0
    %v1572 = vpop.f32.mrb[0].mxu0
    %1573 = vdwg.mxu0
    %v1574 = vadd.f32 %v1569, %v1460
    %v1575 = vxor.u32 %v1574, 2147483648
    %v1576 = vmul.f32 %v1575, 1.442695
    %v1577 = vpow.pop %v1576
    %v1578 = vadd.f32 %v1577, 1.0
    %v1579 = vrcp.pop %v1578
    %v1580 = vmul.f32 1.0, %v1579
    %1581 = vrot.lane.b32.xlu0 %v1460, 64
    %v1582 = vpop.permute.xlu0 %1581
    %v1584 = vmul.f32 %v1580, %v1582
    %1586 = vrot.lane.b32.xlu0 %v1584, 64
    %v1587 = vpop.permute.xlu0 %1586
    %v1589 = vadd.f32 %v1569, %v1587
    %v1590 = vtanh.pop %v1589
    %v1591 = vsub.f32 1.0, %v1580
    %1593 = vrot.lane.b32.xlu0 %v1590, 96
    %v1594 = vpop.permute.xlu0 %1593
    %v1596 = vmul.f32 %v1591, %v1594
    %v1597 = vmul.f32 %v1580, %v1412
    %v1598 = vadd.f32 %v1596, %v1597
    %1600 = vrot.lane.b32.xlu0 %v1598, 96
    %v1601 = vpop.permute.xlu0 %1600
    %1603 = vst.msk [vmem:[#allocation4 + $0x6] sm:$0x1] %vm486, %v1601
    %v1604 = vpack.c.bf16 %v1598, %v1598
    %1606 = vrot.lane.b32.xlu0 %v1604, 96
    %v1607 = vpop.permute.xlu0 %1606
    %v1609 = vsel %vm96, %v1607, 0
    %1611 = vmatprep.subr.bf16.mxu0 0
    %1612 = vmatpush1.bf16.msra.mxu0 %v275
    %1613 = vmatprep.subr.bf16.mxu0 0
    %1614 = vmatpush1.bf16.msra.mxu0 %v276
    %1615 = vmatprep.subr.bf16.mxu0 0
    %1616 = vmatpush1.bf16.msra.mxu0 0
    %1617 = vmatprep.subr.bf16.mxu0 0
    %1618 = vmatpush1.bf16.msra.mxu0 0
    %1619 = vmatprep.subr.bf16.mxu0 0
    %1620 = vmatpush1.bf16.msra.mxu0 0
    %1621 = vmatprep.subr.bf16.mxu0 0
    %1622 = vmatpush1.bf16.msra.mxu0 0
    %1623 = vmatprep.subr.bf16.mxu0 0
    %1624 = vmatpush1.bf16.msra.mxu0 0
    %1625 = vmatprep.subr.bf16.mxu0 0
    %1626 = vmatpush1.bf16.msra.mxu0 0
    %1627 = vmatprep.subr.bf16.mxu0 0
    %1628 = vmatpush1.bf16.msra.mxu0 0
    %1629 = vmatprep.subr.bf16.mxu0 0
    %1630 = vmatpush1.bf16.msra.mxu0 0
    %1631 = vmatprep.subr.bf16.mxu0 0
    %1632 = vmatpush1.bf16.msra.mxu0 0
    %1633 = vmatprep.subr.bf16.mxu0 0
    %1634 = vmatpush1.bf16.msra.mxu0 0
    %1635 = vmatprep.subr.bf16.mxu0 0
    %1636 = vmatpush1.bf16.msra.mxu0 0
    %1637 = vmatprep.subr.bf16.mxu0 0
    %1638 = vmatpush1.bf16.msra.mxu0 0
    %1639 = vmatprep.subr.bf16.mxu0 0
    %1640 = vmatpush1.bf16.msra.mxu0 0
    %1641 = vmatprep.subr.bf16.mxu0 0
    %1642 = vmatpush1.bf16.msra.mxu0 0
    %1643 = vmatprep.mubr.bf16.mxu0 0
    %1644 = vmatmul.mubr.bf16.gmra.mrb[0].mxu0 %v1609
    %v1645 = vpop.f32.mrb[0].mxu0
    %v1646 = vadd.f32 %v71, %v1645
    %v1647 = vpop.f32.mrb[0].mxu0
    %v1648 = vpop.f32.mrb[0].mxu0
    %v1649 = vpop.f32.mrb[0].mxu0
    %1650 = vdwg.mxu0
    %v1651 = vld [vmem:[#allocation2 + $0x7] sm:$0x1]
    %1653 = vrot.lane.b32.xlu0 %v1646, 32
    %v1654 = vpop.permute.xlu0 %1653
    %v1656 = vadd.f32 %v1651, %v1654
    %v1657 = vsel %vm328, %v1656, -inf
    %1658 = vmax.xlane.f32.xlu0 %v1657
    %v1659 = vpop.xlane.xlu0 %1658
    %v1660 = vsub.f32 %v1656, %v1659
    %v1661 = vmul.f32 %v1660, 1.442695
    %v1662 = vpow.pop %v1661
    %v1663 = vsel %vm328, %v1662, 0.0
    %1664 = vadd.xlane.f32.xlu0 %v1663
    %v1665 = vpop.xlane.xlu0 %1664
    %v1666 = vrcp.pop %v1665
    %v1667 = vmul.f32 %v1662, %v1666
    %1668 = vst.msk [vmem:[#allocation14 + $0x7] sm:$0x1] %vm328, %v1667
    %v1669 = vpack.c.bf16 %v1667, %v1667
    %v1671 = vsel %vm342, %v1669, 0
    %1673 = vmatprep.subr.bf16.mxu0 0
    %1674 = vmatpush1.bf16.msra.mxu0 %v348
    %1675 = vmatprep.subr.bf16.mxu0 0
    %1676 = vmatpush1.bf16.msra.mxu0 0
    %1677 = vmatprep.subr.bf16.mxu0 0
    %1678 = vmatpush1.bf16.msra.mxu0 0
    %1679 = vmatprep.subr.bf16.mxu0 0
    %1680 = vmatpush1.bf16.msra.mxu0 0
    %1681 = vmatprep.subr.bf16.mxu0 0
    %1682 = vmatpush1.bf16.msra.mxu0 0
    %1683 = vmatprep.subr.bf16.mxu0 0
    %1684 = vmatpush1.bf16.msra.mxu0 0
    %1685 = vmatprep.subr.bf16.mxu0 0
    %1686 = vmatpush1.bf16.msra.mxu0 0
    %1687 = vmatprep.subr.bf16.mxu0 0
    %1688 = vmatpush1.bf16.msra.mxu0 0
    %1689 = vmatprep.subr.bf16.mxu0 0
    %1690 = vmatpush1.bf16.msra.mxu0 0
    %1691 = vmatprep.subr.bf16.mxu0 0
    %1692 = vmatpush1.bf16.msra.mxu0 0
    %1693 = vmatprep.subr.bf16.mxu0 0
    %1694 = vmatpush1.bf16.msra.mxu0 0
    %1695 = vmatprep.subr.bf16.mxu0 0
    %1696 = vmatpush1.bf16.msra.mxu0 0
    %1697 = vmatprep.subr.bf16.mxu0 0
    %1698 = vmatpush1.bf16.msra.mxu0 0
    %1699 = vmatprep.subr.bf16.mxu0 0
    %1700 = vmatpush1.bf16.msra.mxu0 0
    %1701 = vmatprep.subr.bf16.mxu0 0
    %1702 = vmatpush1.bf16.msra.mxu0 0
    %1703 = vmatprep.subr.bf16.mxu0 0
    %1704 = vmatpush1.bf16.msra.mxu0 0
    %1705 = vmatprep.mubr.bf16.mxu0 0
    %1706 = vmatmul.mubr.bf16.gmra.mrb[0].mxu0 %v1671
    %v1707 = vpop.f32.mrb[0].mxu0
    %v1708 = vadd.f32 0.0, %v1707
    %v1709 = vpop.f32.mrb[0].mxu0
    %v1710 = vpop.f32.mrb[0].mxu0
    %v1711 = vpop.f32.mrb[0].mxu0
    %1712 = vdwg.mxu0
    %v1713 = vld [vmem:[#allocation3 + $0x7] sm:$0x1]
    %v1714 = vadd.f32 %v1713, %v1708
    %v1715 = vmax.f32 %v1714, 0.0
    %v1716 = vpack.c.bf16 %v1715, %v1715
    %v1718 = vsel %vm96, %v1716, 0
    %1720 = vmatprep.subr.bf16.mxu0 0
    %1721 = vmatpush1.bf16.msra.mxu0 %v402
    %1722 = vmatprep.subr.bf16.mxu0 0
    %1723 = vmatpush1.bf16.msra.mxu0 %v403
    %1724 = vmatprep.subr.bf16.mxu0 0
    %1725 = vmatpush1.bf16.msra.mxu0 0
    %1726 = vmatprep.subr.bf16.mxu0 0
    %1727 = vmatpush1.bf16.msra.mxu0 0
    %1728 = vmatprep.subr.bf16.mxu0 0
    %1729 = vmatpush1.bf16.msra.mxu0 0
    %1730 = vmatprep.subr.bf16.mxu0 0
    %1731 = vmatpush1.bf16.msra.mxu0 0
    %1732 = vmatprep.subr.bf16.mxu0 0
    %1733 = vmatpush1.bf16.msra.mxu0 0
    %1734 = vmatprep.subr.bf16.mxu0 0
    %1735 = vmatpush1.bf16.msra.mxu0 0
    %1736 = vmatprep.subr.bf16.mxu0 0
    %1737 = vmatpush1.bf16.msra.mxu0 0
    %1738 = vmatprep.subr.bf16.mxu0 0
    %1739 = vmatpush1.bf16.msra.mxu0 0
    %1740 = vmatprep.subr.bf16.mxu0 0
    %1741 = vmatpush1.bf16.msra.mxu0 0
    %1742 = vmatprep.subr.bf16.mxu0 0
    %1743 = vmatpush1.bf16.msra.mxu0 0
    %1744 = vmatprep.subr.bf16.mxu0 0
    %1745 = vmatpush1.bf16.msra.mxu0 0
    %1746 = vmatprep.subr.bf16.mxu0 0
    %1747 = vmatpush1.bf16.msra.mxu0 0
    %1748 = vmatprep.subr.bf16.mxu0 0
    %1749 = vmatpush1.bf16.msra.mxu0 0
    %1750 = vmatprep.subr.bf16.mxu0 0
    %1751 = vmatpush1.bf16.msra.mxu0 0
    %1752 = vmatprep.mubr.bf16.mxu0 0
    %1753 = vmatmul.mubr.bf16.gmra.mrb[0].mxu0 %v1718
    %v1754 = vpop.f32.mrb[0].mxu0
    %v1755 = vadd.f32 %v72, %v1754
    %v1756 = vpop.f32.mrb[0].mxu0
    %v1757 = vpop.f32.mrb[0].mxu0
    %v1758 = vpop.f32.mrb[0].mxu0
    %1759 = vdwg.mxu0
    %v1760 = vadd.f32 %v1755, %v1646
    %v1761 = vxor.u32 %v1760, 2147483648
    %v1762 = vmul.f32 %v1761, 1.442695
    %v1763 = vpow.pop %v1762
    %v1764 = vadd.f32 %v1763, 1.0
    %v1765 = vrcp.pop %v1764
    %v1766 = vmul.f32 1.0, %v1765
    %1767 = vrot.lane.b32.xlu0 %v1646, 64
    %v1768 = vpop.permute.xlu0 %1767
    %v1770 = vmul.f32 %v1766, %v1768
    %1772 = vrot.lane.b32.xlu0 %v1770, 64
    %v1773 = vpop.permute.xlu0 %1772
    %v1775 = vadd.f32 %v1755, %v1773
    %v1776 = vtanh.pop %v1775
    %v1777 = vsub.f32 1.0, %v1766
    %1779 = vrot.lane.b32.xlu0 %v1776, 96
    %v1780 = vpop.permute.xlu0 %1779
    %v1782 = vmul.f32 %v1777, %v1780
    %v1783 = vmul.f32 %v1766, %v1598
    %v1784 = vadd.f32 %v1782, %v1783
    %1786 = vrot.lane.b32.xlu0 %v1784, 96
    %v1787 = vpop.permute.xlu0 %1786
    %1789 = vst.msk [vmem:[#allocation4 + $0x7] sm:$0x1] %vm486, %v1787
    %1790 = vst.msk [vmem:[#allocation12] sm:$0x1] %vm486, %v1787
    %v1791 = vld [vmem:[#allocation4] sm:$0xff]
    %v1792 = vpack.c.bf16 %v1791, %v1791
    %v1793 = vld [vmem:[#allocation10 + $0x50] sm:$0xf]
    %v1794 = vld [vmem:[#allocation10 + $0x54] sm:$0xf]
    %v1795 = vld [vmem:[#allocation10 + $0x58] sm:$0xf]
    %v1796 = vld [vmem:[#allocation10 + $0x5c] sm:$0xf]
    %v1797 = vld [vmem:[%s4 + $0x4] sm:$0x1]
    %v1798 = vlaneseq
    %v1799 = vshrl.u32 %v1798, 7
    %v1800 = vsub.s32 0, %v1799
    %v1801 = vrot.slane %v1797, %v1800
    %v1806 = vunpack.c.l.b16 %v1793
    %v1807 = vunpack.c.l.b16 %v1794
    %v1808 = vunpack.c.l.b16 %v1795
    %v1809 = vunpack.c.l.b16 %v1796
    %v1810 = vpack.c.b16 %v1807, %v1806
    %v1811 = vpack.c.b16 %v1809, %v1808
    %v1815 = vsel %vm96, %v1792, 0
    %1817 = vmatprep.subr.bf16.mxu0 0
    %1818 = vmatpush1.bf16.msra.mxu0 %v1810
    %1819 = vmatprep.subr.bf16.mxu0 0
    %1820 = vmatpush1.bf16.msra.mxu0 %v1811
    %1821 = vmatprep.subr.bf16.mxu0 0
    %1822 = vmatpush1.bf16.msra.mxu0 0
    %1823 = vmatprep.subr.bf16.mxu0 0
    %1824 = vmatpush1.bf16.msra.mxu0 0
    %1825 = vmatprep.subr.bf16.mxu0 0
    %1826 = vmatpush1.bf16.msra.mxu0 0
    %1827 = vmatprep.subr.bf16.mxu0 0
    %1828 = vmatpush1.bf16.msra.mxu0 0
    %1829 = vmatprep.subr.bf16.mxu0 0
    %1830 = vmatpush1.bf16.msra.mxu0 0
    %1831 = vmatprep.subr.bf16.mxu0 0
    %1832 = vmatpush1.bf16.msra.mxu0 0
    %1833 = vmatprep.subr.bf16.mxu0 0
    %1834 = vmatpush1.bf16.msra.mxu0 0
    %1835 = vmatprep.subr.bf16.mxu0 0
    %1836 = vmatpush1.bf16.msra.mxu0 0
    %1837 = vmatprep.subr.bf16.mxu0 0
    %1838 = vmatpush1.bf16.msra.mxu0 0
    %1839 = vmatprep.subr.bf16.mxu0 0
    %1840 = vmatpush1.bf16.msra.mxu0 0
    %1841 = vmatprep.subr.bf16.mxu0 0
    %1842 = vmatpush1.bf16.msra.mxu0 0
    %1843 = vmatprep.subr.bf16.mxu0 0
    %1844 = vmatpush1.bf16.msra.mxu0 0
    %1845 = vmatprep.subr.bf16.mxu0 0
    %1846 = vmatpush1.bf16.msra.mxu0 0
    %1847 = vmatprep.subr.bf16.mxu0 0
    %1848 = vmatpush1.bf16.msra.mxu0 0
    %1849 = vmatprep.mubr.bf16.mxu0 0
    %1850 = vmatmul.mubr.bf16.gmra.mrb[0].mxu0 %v1815
    %v1851 = vpop.f32.mrb[0].mxu0
    %v1852 = vadd.f32 %v1801, %v1851
    %v1853 = vpop.f32.mrb[0].mxu0
    %v1854 = vpop.f32.mrb[0].mxu0
    %v1855 = vpop.f32.mrb[0].mxu0
    %1856 = vdwg.mxu0
    %1857 = vmax.xlane.f32.xlu0 %v1852
    %v1858 = vpop.xlane.xlu0 %1857
    %v1859 = vsub.f32 %v1852, %v1858
    %v1860 = vmul.f32 %v1859, 1.442695
    %v1861 = vpow.pop %v1860
    %1862 = vadd.xlane.f32.xlu0 %v1861
    %v1863 = vpop.xlane.xlu0 %1862
    %v1864 = vlog2.pop %v1863
    %v1865 = vmul.f32 %v1864, 0.6931472
    %v1866 = vsub.f32 %v1859, %v1865
    %1867 = vst [vmem:[#allocation11] sm:$0xff] %v1866
    // Predicated region
    $region34: #{tpu_custom_call.1} parent=1 // pred_check
      _
    $region35: #{tpu_custom_call.1} parent=1 // pred_check_branch
      %1869 = sbr.rel (0) target = $region37
    $region36: #{tpu_custom_call.1} parent=1 // pred_region
      %s1871 = ssub.s32 128, 128
      %1872 = vsyncadd [#allocation7], %s1871
      %s1874 = sshll.u32 [#allocation11], 4
      %s1875 = int_to_ptr.vmem [resolvable:$true] %s1874
      %1877 = dma.vmem_to_hbm [thread:$0]  %s1875, 128, %s5, [#allocation7]
    $region37: #{tpu_custom_call.1} parent=1 // pred_fallthru
      _
    // Predicated region
    $region38: #{tpu_custom_call.1} parent=1 // pred_check
      _
    $region39: #{tpu_custom_call.1} parent=1 // pred_check_branch
      %1879 = sbr.rel (0) target = $region41
    $region40: #{tpu_custom_call.1} parent=1 // pred_region
      %s1881 = ssub.s32 16, 16
      %1882 = vsyncadd [#allocation13], %s1881
      %s1884 = sshll.u32 [#allocation12], 4
      %s1885 = int_to_ptr.vmem [resolvable:$true] %s1884
      %1887 = dma.vmem_to_hbm [thread:$0]  %s1885, 16, %s6, [#allocation13]
    $region41: #{tpu_custom_call.1} parent=1 // pred_fallthru
      _
    // Predicated region
    $region42: #{tpu_custom_call.1} parent=1 // pred_check
      _
    $region43: #{tpu_custom_call.1} parent=1 // pred_check_branch
      %1889 = sbr.rel (0) target = $region45
    $region44: #{tpu_custom_call.1} parent=1 // pred_region
      %s1891 = ssub.s32 128, 128
      %1892 = vsyncadd [#allocation13], %s1891
      %s1894 = sshll.u32 [#allocation14], 4
      %s1895 = int_to_ptr.vmem [resolvable:$true] %s1894
      %1897 = dma.vmem_to_hbm [thread:$0]  %s1895, 128, %s7, [#allocation13]
    $region45: #{tpu_custom_call.1} parent=1 // pred_fallthru
      _
    // Predicated region
    $region46: #{tpu_custom_call.1} parent=1 // pred_check
      _
    $region47: #{tpu_custom_call.1} parent=1 // pred_check_branch
      %1899 = sbr.rel (0) target = $region49
    $region48: #{tpu_custom_call.1} parent=1 // pred_region
      %1900 = dma.done [#allocation7], 128
    $region49: #{tpu_custom_call.1} parent=1 // pred_fallthru
      _
    // Predicated region
    $region50: #{tpu_custom_call.1} parent=1 // pred_check
      _
    $region51: #{tpu_custom_call.1} parent=1 // pred_check_branch
      %1902 = sbr.rel (0) target = $region53
    $region52: #{tpu_custom_call.1} parent=1 // pred_region
      %1903 = dma.done [#allocation13], 16
    $region53: #{tpu_custom_call.1} parent=1 // pred_fallthru
      _
    // Predicated region
    $region54: #{tpu_custom_call.1} parent=1 // pred_check
      _
    $region55: #{tpu_custom_call.1} parent=1 // pred_check_branch
      %1905 = sbr.rel (0) target = $region57
    $region56: #{tpu_custom_call.1} parent=1 // pred_region
      %1906 = dma.done [#allocation13], 128
    $region57: #{tpu_custom_call.1} parent=1 // pred_fallthru
      _
    %1907 = vsyncpa [#allocation6], 1
    %1908 = vsyncpa [#allocation9], 1
    %1909 = vsyncpa [#allocation7], 1
    %1910 = vsyncpa [#allocation13], 1

</llo_original>
